<compile_context>
chip_gen: v5e
topology: v5e:2x2
jax: 0.10.0
libtpu: 0.0.40
codegen_flags: <defaults>
</compile_context>

<pallas_src>
import functools

import jax
import jax.numpy as jnp
from jax.experimental import pallas as pl
from jax.experimental.pallas import tpu as pltpu


# ----------------------------------------------------------------------------
# Fused (BN+ReLU prologue) matmul (+bias, +residual epilogue) kernel
# ----------------------------------------------------------------------------
def _fused_conv_mm_kernel(*refs, in_affine, has_res):
    refs = list(refs)
    x_ref, w_ref, b_ref = refs[0], refs[1], refs[2]
    idx = 3
    if in_affine:
        s_ref, t_ref = refs[idx], refs[idx + 1]
        idx += 2
    if has_res:
        r_ref = refs[idx]
        idx += 1
    o_ref = refs[idx]
    acc_ref = refs[idx + 1]

    k = pl.program_id(2)

    @pl.when(k == 0)
    def _():
        acc_ref[...] = jnp.zeros_like(acc_ref)

    if in_affine:
        # fused BatchNorm (per-channel affine) + ReLU on the LHS tile, in f32.
        x = x_ref[...].astype(jnp.float32)
        x = jnp.maximum(x * s_ref[...] + t_ref[...], 0.0)
    else:
        x = x_ref[...]
    xb = x.astype(jnp.bfloat16)          # feed the MXU in bf16, f32 accumulate

    acc_ref[...] += jnp.dot(xb, w_ref[...], preferred_element_type=jnp.float32)

    @pl.when(k == pl.num_programs(2) - 1)
    def _():
        y = acc_ref[...] + b_ref[...]
        if has_res:
            y = y + r_ref[...].astype(jnp.float32)
        o_ref[...] = y.astype(o_ref.dtype)


def _pick_tile(dim, target, granule):
    """Largest tile <= target that divides dim and is a multiple of granule,
    else the full dim (full-extent blocks are always legal)."""
    if dim <= target:
        return dim
    t = (target // granule) * granule
    while t >= granule:
        if dim % t == 0:
            return t
        t -= granule
    return dim


def fused_conv_mm(x, w, b, *, in_scale=None, in_shift=None, residual=None,
                  out_dtype=None, tm_target=512, tn_target=512, tk_target=1024):
    """y = [ relu(x*in_scale + in_shift) ] @ w + b [ + residual ]

    x: (M, K)   w: (K, N)   b: (N,)   in_scale/in_shift: (K,)   residual: (M, N)
    """
    M, K = x.shape
    K2, N = w.shape
    assert K == K2, (K, K2)
    in_affine = in_scale is not None
    has_res = residual is not None
    out_dtype = x.dtype if out_dtype is None else out_dtype

    w = w.astype(jnp.bfloat16)                 # cast weights once, outside kernel
    b2 = b.reshape(1, N).astype(jnp.float32)

    tm = _pick_tile(M, tm_target, 16)          # sublane granule (bf16-safe)
    tn = _pick_tile(N, tn_target, 128)         # lane granule
    tk = _pick_tile(K, tk_target, 128)
    # Make sure the two "parallel" grid axes have >= 2 blocks so megacore /
    # v7x's 2 TensorCores can shard the work, when M allows it.
    if (M // tm) * (N // tn) < 2 and tm % 32 == 0:
        tm //= 2
    grid = (M // tm, N // tn, K // tk)

    in_specs = [
        pl.BlockSpec((tm, tk), lambda i, j, k: (i, k)),
        pl.BlockSpec((tk, tn), lambda i, j, k: (k, j)),
        pl.BlockSpec((1, tn), lambda i, j, k: (0, j)),
    ]
    args = [x, w, b2]
    if in_affine:
        in_specs += [pl.BlockSpec((1, tk), lambda i, j, k: (0, k)),
                     pl.BlockSpec((1, tk), lambda i, j, k: (0, k))]
        args += [in_scale.reshape(1, K).astype(jnp.float32),
                 in_shift.reshape(1, K).astype(jnp.float32)]
    if has_res:
        in_specs.append(pl.BlockSpec((tm, tn), lambda i, j, k: (i, j)))
        args.append(residual)

    bytes_accessed = (M * K * x.dtype.itemsize + K * N * 2
                      + M * N * jnp.dtype(out_dtype).itemsize)
    if has_res:
        bytes_accessed += M * N * residual.dtype.itemsize

    return pl.pallas_call(
        functools.partial(_fused_conv_mm_kernel,
                          in_affine=in_affine, has_res=has_res),
        out_shape=jax.ShapeDtypeStruct((M, N), out_dtype),
        grid=grid,
        in_specs=in_specs,
        out_specs=pl.BlockSpec((tm, tn), lambda i, j, k: (i, j)),
        scratch_shapes=[pltpu.VMEM((tm, tn), jnp.float32)],
        compiler_params=pltpu.CompilerParams(
            dimension_semantics=("parallel", "parallel", "arbitrary"),
            vmem_limit_bytes=32 * 1024 * 1024),
        cost_estimate=pl.CostEstimate(flops=2 * M * N * K, transcendentals=0,
                                      bytes_accessed=bytes_accessed),
    )(*args)


# ----------------------------------------------------------------------------
# Glue helpers (plain JAX: layout conversion, im2col, BN scale/shift)
# ----------------------------------------------------------------------------
def _w1x1(w):
    # PyTorch (Cout, Cin, 1, 1) -> (Cin, Cout)
    return jnp.transpose(w[:, :, 0, 0], (1, 0))


def _w3x3(w):
    # PyTorch (Cout, Cin, 3, 3) -> (9*Cin, Cout), K ordered (kh, kw, cin)
    return jnp.transpose(w, (2, 3, 1, 0)).reshape(-1, w.shape[0])


def _im2col_3x3(x):
    # x: (B, H, W, C) -> (B*H*W, 9*C), padding=1, K ordered (kh, kw, cin).
    # NOTE: x must already be the post-BN/ReLU activation (padding zeros stay 0).
    B, H, W, C = x.shape
    xp = jnp.pad(x, ((0, 0), (1, 1), (1, 1), (0, 0)))
    cols = [xp[:, dy:dy + H, dx:dx + W, :] for dy in range(3) for dx in range(3)]
    return jnp.concatenate(cols, axis=-1).reshape(B * H * W, 9 * C)


def _batch_stats(x_nhwc):
    x = x_nhwc.astype(jnp.float32)
    mean = jnp.mean(x, axis=(0, 1, 2))
    var = jnp.mean(jnp.square(x - mean), axis=(0, 1, 2))   # biased, torch BN train
    return mean, var


def _bn_scale_shift(gamma, beta, mean, var, eps=1e-5):
    scale = gamma * jax.lax.rsqrt(var + eps)
    shift = beta - mean * scale
    return scale, shift


# ----------------------------------------------------------------------------
# PreActBottleNeck forward
# ----------------------------------------------------------------------------
def preact_bottleneck_forward(params, x_nchw, *, stride, training=True,
                              expansion=4):
    x = jnp.transpose(x_nchw, (0, 2, 3, 1))           # NHWC (channels -> lanes)
    B, H, W, Cin = x.shape
    out_ch = params["w1"].shape[0]

    # --- BN1 (elementwise BN+ReLU commutes with the strided 1x1-conv gather,
    # so it is fused into the conv1 prologue) --------------------------------
    if training:
        m1, v1 = _batch_stats(x)
    else:
        m1, v1 = params["bn1_mean"], params["bn1_var"]
    s1, t1 = _bn_scale_shift(params["bn1_g"], params["bn1_b"], m1, v1)

    xs = x[:, ::stride, ::stride, :]                  # positions a 1x1 stride-s conv reads
    Hs, Ws = xs.shape[1], xs.shape[2]
    M = B * Hs * Ws
    xs2 = xs.reshape(M, Cin)

    # --- conv1: relu(bn1(x)) @ W1 + b1 (fused prologue) ----------------------
    y1 = fused_conv_mm(xs2, _w1x1(params["w1"]), params["b1"],
                       in_scale=s1, in_shift=t1, out_dtype=jnp.bfloat16)
    y1n = y1.reshape(B, Hs, Ws, out_ch)

    # --- conv2: 3x3 pad=1 on relu(bn2(y1)) -----------------------------------
    # The activation is applied BEFORE zero-padding (PyTorch Conv2d pads its
    # already-activated input), so BN2+ReLU cannot be fused past the padding.
    if training:
        m2, v2 = _batch_stats(y1n)
    else:
        m2, v2 = params["bn2_mean"], params["bn2_var"]
    s2, t2 = _bn_scale_shift(params["bn2_g"], params["bn2_b"], m2, v2)
    a2 = jnp.maximum(y1n.astype(jnp.float32) * s2 + t2, 0.0).astype(jnp.bfloat16)
    patches = _im2col_3x3(a2)                         # (M, 9*out_ch) bf16
    y2 = fused_conv_mm(patches, _w3x3(params["w2"]), params["b2"],
                       out_dtype=jnp.bfloat16)
    y2n = y2.reshape(B, Hs, Ws, out_ch)

    # --- shortcut -------------------------------------------------------------
    if "wsc" in params:
        shortcut = fused_conv_mm(xs2, _w1x1(params["wsc"]), params["bsc"],
                                 out_dtype=jnp.bfloat16)
    else:
        shortcut = xs2                                # identity (shapes match)

    # --- conv3: relu(bn3(y2)) @ W3 + b3 + shortcut, all in one kernel ---------
    if training:
        m3, v3 = _batch_stats(y2n)
    else:
        m3, v3 = params["bn3_mean"], params["bn3_var"]
    s3, t3 = _bn_scale_shift(params["bn3_g"], params["bn3_b"], m3, v3)
    y3 = fused_conv_mm(y2, _w1x1(params["w3"]), params["b3"],
                       in_scale=s3, in_shift=t3, residual=shortcut,
                       out_dtype=x_nchw.dtype)

    y3 = y3.reshape(B, Hs, Ws, out_ch * expansion)
    return jnp.transpose(y3, (0, 3, 1, 2))            # back to NCHW


# ----------------------------------------------------------------------------
# Pure-JAX f32 reference (for correctness check)
# ----------------------------------------------------------------------------
def _ref_forward(params, x, *, stride, training=True):
    hi = jax.lax.Precision.HIGHEST

    def bn(t, g, b, rm, rv):
        if training:
            mean = jnp.mean(t, axis=(0, 2, 3))
            var = jnp.mean((t - mean[None, :, None, None]) ** 2, axis=(0, 2, 3))
        else:
            mean, var = rm, rv
        s = g * jax.lax.rsqrt(var + 1e-5)
        sh = b - mean * s
        return t * s[None, :, None, None] + sh[None, :, None, None]

    def conv(t, w, b, stride=1, padding=0):
        y = jax.lax.conv_general_dilated(
            t, w, (stride, stride), [(padding, padding)] * 2,
            dimension_numbers=("NCHW", "OIHW", "NCHW"), precision=hi)
        return y + b[None, :, None, None]

    h = jnp.maximum(bn(x, params["bn1_g"], params["bn1_b"],
                       params["bn1_mean"], params["bn1_var"]), 0.0)
    h = conv(h, params["w1"], params["b1"], stride=stride)
    h = jnp.maximum(bn(h, params["bn2_g"], params["bn2_b"],
                       params["bn2_mean"], params["bn2_var"]), 0.0)
    h = conv(h, params["w2"], params["b2"], padding=1)
    h = jnp.maximum(bn(h, params["bn3_g"], params["bn3_b"],
                       params["bn3_mean"], params["bn3_var"]), 0.0)
    h = conv(h, params["w3"], params["b3"])
    sc = conv(x, params["wsc"], params["bsc"], stride=stride) if "wsc" in params else x
    return h + sc


# ----------------------------------------------------------------------------
# Deterministic parameter init (PyTorch weight layouts)
# ----------------------------------------------------------------------------
def init_params(key, *, in_channels, out_channels, stride, expansion=4):
    ks = jax.random.split(key, 16)

    def nrm(k, shape, s=0.05):
        return jax.random.normal(k, shape, jnp.float32) * s

    p = dict(
        bn1_g=1.0 + nrm(ks[0], (in_channels,), 0.1),
        bn1_b=nrm(ks[1], (in_channels,), 0.1),
        bn1_mean=nrm(ks[2], (in_channels,), 0.1),
        bn1_var=1.0 + jnp.abs(nrm(ks[3], (in_channels,), 0.1)),
        w1=nrm(ks[4], (out_channels, in_channels, 1, 1)),
        b1=nrm(ks[5], (out_channels,), 0.02),
        bn2_g=1.0 + nrm(ks[6], (out_channels,), 0.1),
        bn2_b=nrm(ks[7], (out_channels,), 0.1),
        bn2_mean=jnp.zeros((out_channels,), jnp.float32),
        bn2_var=jnp.ones((out_channels,), jnp.float32),
        w2=nrm(ks[8], (out_channels, out_channels, 3, 3)),
        b2=nrm(ks[9], (out_channels,), 0.02),
        bn3_g=1.0 + nrm(ks[10], (out_channels,), 0.1),
        bn3_b=nrm(ks[11], (out_channels,), 0.1),
        bn3_mean=jnp.zeros((out_channels,), jnp.float32),
        bn3_var=jnp.ones((out_channels,), jnp.float32),
        w3=nrm(ks[12], (out_channels * expansion, out_channels, 1, 1)),
        b3=nrm(ks[13], (out_channels * expansion,), 0.02),
    )
    if stride != 1 or in_channels != out_channels * expansion:
        p["wsc"] = nrm(ks[14], (out_channels * expansion, in_channels, 1, 1))
        p["bsc"] = nrm(ks[15], (out_channels * expansion,), 0.02)
    return p


if __name__ == "__main__":
    # Config 1: downsampling block (stride != 1 -> shortcut conv path).
    B, Cin, H, W = 2, 32, 16, 16
    out_ch, stride = 16, 2

    key = jax.random.PRNGKey(0)
    kp, kx = jax.random.split(key)
    params = init_params(kp, in_channels=Cin, out_channels=out_ch, stride=stride)
    x = jax.random.normal(kx, (B, Cin, H, W), jnp.float32)

    fwd = jax.jit(functools.partial(
        preact_bottleneck_forward, stride=stride, training=True))
    out = fwd(params, x)
    jax.block_until_ready(out)

    expected = (B, out_ch * 4, H // stride, W // stride)
    assert out.shape == expected, out.shape
    assert bool(jnp.all(jnp.isfinite(out)))

    ref = _ref_forward(params, x, stride=stride, training=True)
    err = float(jnp.max(jnp.abs(out - ref)))
    # bf16 MXU / bf16 intermediates vs f32 reference -> loosened tolerance.
    assert bool(jnp.allclose(out, ref, rtol=3e-2, atol=3e-2)), err

    # Config 2: identity-shortcut block (stride=1, in == out*expansion).
    Cin2, out2, H2 = 64, 16, 8
    params2 = init_params(kp, in_channels=Cin2, out_channels=out2, stride=1)
    x2 = jax.random.normal(kx, (B, Cin2, H2, H2), jnp.float32)
    fwd2 = jax.jit(functools.partial(
        preact_bottleneck_forward, stride=1, training=True))
    out2_ = fwd2(params2, x2)
    jax.block_until_ready(out2_)
    assert out2_.shape == (B, out2 * 4, H2, H2), out2_.shape
    ref2 = _ref_forward(params2, x2, stride=1, training=True)
    err2 = float(jnp.max(jnp.abs(out2_ - ref2)))
    assert bool(jnp.allclose(out2_, ref2, rtol=3e-2, atol=3e-2)), err2

    print("KERNEL_OK")
</pallas_src>

<mosaic_0001>
module attributes {stable_mosaic.version = 11 : i64} {
  func.func @_fused_conv_mm_kernel(%arg0: i32, %arg1: i32, %arg2: i32, %arg3: memref<64x32xf32, #tpu.memory_space<vmem>>, %arg4: memref<32x16xbf16, #tpu.memory_space<vmem>>, %arg5: memref<1x16xf32, #tpu.memory_space<vmem>>, %arg6: memref<1x32xf32, #tpu.memory_space<vmem>>, %arg7: memref<1x32xf32, #tpu.memory_space<vmem>>, %arg8: memref<64x16xbf16, #tpu.memory_space<vmem>>, %arg9: memref<64x16xf32, #tpu.memory_space<vmem>>) attributes {dimension_semantics = [#tpu.dimension_semantics<parallel>, #tpu.dimension_semantics<parallel>, #tpu.dimension_semantics<arbitrary>], iteration_bounds = array<i64: 2, 1, 1>, scalar_prefetch = 0 : i64, scratch_operands = 1 : i64, tpu.core_type = #tpu.core_type<tc>, window_params = [{transform_indices = @transform_0, window_bounds = array<i64: 64, 32>}, {transform_indices = @transform_1, window_bounds = array<i64: 32, 16>}, {transform_indices = @transform_2, window_bounds = array<i64: 1, 16>}, {transform_indices = @transform_3, window_bounds = array<i64: 1, 32>}, {transform_indices = @transform_4, window_bounds = array<i64: 1, 32>}, {transform_indices = @transform_5, window_bounds = array<i64: 64, 16>}]} {
    %c0_i32 = arith.constant 0 : i32
    %0 = arith.cmpi eq, %arg2, %c0_i32 : i32
    %1 = arith.extui %0 : i1 to i32
    %c0_i32_0 = arith.constant 0 : i32
    %2 = arith.cmpi ne, %1, %c0_i32_0 : i32
    scf.if %2 {
      %cst_15 = arith.constant 0.000000e+00 : f32
      %21 = vector.broadcast %cst_15 : f32 to vector<64x16xf32>
      %c0_16 = arith.constant 0 : index
      %c0_17 = arith.constant 0 : index
      %22 = vector.load %arg9[%c0_16, %c0_17] : memref<64x16xf32, #tpu.memory_space<vmem>>, vector<64x16xf32>
      tpu.vector_store %arg9[%c0_16, %c0_17], %21 {strides = array<i32>} : memref<64x16xf32, #tpu.memory_space<vmem>>, vector<64x16xf32>,
    } else {
    }
    %c0 = arith.constant 0 : index
    %c0_1 = arith.constant 0 : index
    %3 = vector.load %arg3[%c0, %c0_1] : memref<64x32xf32, #tpu.memory_space<vmem>>, vector<64x32xf32>
    %c0_2 = arith.constant 0 : index
    %c0_3 = arith.constant 0 : index
    %4 = vector.load %arg6[%c0_2, %c0_3] : memref<1x32xf32, #tpu.memory_space<vmem>>, vector<1x32xf32>
    %5 = vector.broadcast %4 : vector<1x32xf32> to vector<64x32xf32>
    %6 = arith.mulf %3, %5 : vector<64x32xf32>
    %c0_4 = arith.constant 0 : index
    %c0_5 = arith.constant 0 : index
    %7 = vector.load %arg7[%c0_4, %c0_5] : memref<1x32xf32, #tpu.memory_space<vmem>>, vector<1x32xf32>
    %8 = vector.broadcast %7 : vector<1x32xf32> to vector<64x32xf32>
    %9 = arith.addf %6, %8 : vector<64x32xf32>
    %cst = arith.constant 0.000000e+00 : f32
    %10 = vector.broadcast %cst : f32 to vector<64x32xf32>
    %11 = arith.maximumf %9, %10 : vector<64x32xf32>
    %12 = arith.truncf %11 : vector<64x32xf32> to vector<64x32xbf16>
    %c0_6 = arith.constant 0 : index
    %c0_7 = arith.constant 0 : index
    %13 = vector.load %arg9[%c0_6, %c0_7] : memref<64x16xf32, #tpu.memory_space<vmem>>, vector<64x16xf32>
    %c0_8 = arith.constant 0 : index
    %c0_9 = arith.constant 0 : index
    %14 = vector.load %arg4[%c0_8, %c0_9] : memref<32x16xbf16, #tpu.memory_space<vmem>>, vector<32x16xbf16>
    %cst_10 = arith.constant dense<0.000000e+00> : vector<64x16xf32>
    %15 = tpu.matmul %12, %14, %cst_10 {dimension_numbers = #tpu.dot_dimension_numbers<[1], [0], [0], [1], [0, 0, 1, 1], [], []>} : vector<64x32xbf16>, vector<32x16xbf16>, vector<64x16xf32> -> vector<64x16xf32>
    %16 = arith.addf %13, %15 : vector<64x16xf32>
    %c0_11 = arith.constant 0 : index
    %c0_12 = arith.constant 0 : index
    %17 = vector.load %arg9[%c0_11, %c0_12] : memref<64x16xf32, #tpu.memory_space<vmem>>, vector<64x16xf32>
    tpu.vector_store %arg9[%c0_11, %c0_12], %16 {strides = array<i32>} : memref<64x16xf32, #tpu.memory_space<vmem>>, vector<64x16xf32>,
    %c0_i32_13 = arith.constant 0 : i32
    %18 = arith.cmpi eq, %arg2, %c0_i32_13 : i32
    %19 = arith.extui %18 : i1 to i32
    %c0_i32_14 = arith.constant 0 : i32
    %20 = arith.cmpi ne, %19, %c0_i32_14 : i32
    scf.if %20 {
      %c0_15 = arith.constant 0 : index
      %c0_16 = arith.constant 0 : index
      %21 = vector.load %arg9[%c0_15, %c0_16] : memref<64x16xf32, #tpu.memory_space<vmem>>, vector<64x16xf32>
      %c0_17 = arith.constant 0 : index
      %c0_18 = arith.constant 0 : index
      %22 = vector.load %arg5[%c0_17, %c0_18] : memref<1x16xf32, #tpu.memory_space<vmem>>, vector<1x16xf32>
      %23 = vector.broadcast %22 : vector<1x16xf32> to vector<64x16xf32>
      %24 = arith.addf %21, %23 : vector<64x16xf32>
      %25 = arith.truncf %24 : vector<64x16xf32> to vector<64x16xbf16>
      %c0_19 = arith.constant 0 : index
      %c0_20 = arith.constant 0 : index
      %26 = vector.load %arg8[%c0_19, %c0_20] : memref<64x16xbf16, #tpu.memory_space<vmem>>, vector<64x16xbf16>
      tpu.vector_store %arg8[%c0_19, %c0_20], %25 {strides = array<i32>} : memref<64x16xbf16, #tpu.memory_space<vmem>>, vector<64x16xbf16>,
    } else {
    }
    return
  }
  func.func @transform_0(%arg0: i32, %arg1: i32, %arg2: i32) -> (i32, i32) {
    %c0_i32 = arith.constant 0 : i32
    return %arg0, %arg2 : i32, i32
  }
  func.func @transform_1(%arg0: i32, %arg1: i32, %arg2: i32) -> (i32, i32) {
    %c0_i32 = arith.constant 0 : i32
    return %arg2, %arg1 : i32, i32
  }
  func.func @transform_2(%arg0: i32, %arg1: i32, %arg2: i32) -> (i32, i32) {
    %c0_i32 = arith.constant 0 : i32
    %c0_i32_0 = arith.constant 0 : i32
    return %c0_i32, %arg1 : i32, i32
  }
  func.func @transform_3(%arg0: i32, %arg1: i32, %arg2: i32) -> (i32, i32) {
    %c0_i32 = arith.constant 0 : i32
    %c0_i32_0 = arith.constant 0 : i32
    return %c0_i32, %arg2 : i32, i32
  }
  func.func @transform_4(%arg0: i32, %arg1: i32, %arg2: i32) -> (i32, i32) {
    %c0_i32 = arith.constant 0 : i32
    %c0_i32_0 = arith.constant 0 : i32
    return %c0_i32, %arg2 : i32, i32
  }
  func.func @transform_5(%arg0: i32, %arg1: i32, %arg2: i32) -> (i32, i32) {
    %c0_i32 = arith.constant 0 : i32
    return %arg0, %arg1 : i32, i32
  }
}

module attributes {stable_mosaic.version = 11 : i64} {
  func.func @_fused_conv_mm_kernel(%arg0: i32, %arg1: i32, %arg2: i32, %arg3: memref<64x144xbf16, #tpu.memory_space<vmem>>, %arg4: memref<144x16xbf16, #tpu.memory_space<vmem>>, %arg5: memref<1x16xf32, #tpu.memory_space<vmem>>, %arg6: memref<64x16xbf16, #tpu.memory_space<vmem>>, %arg7: memref<64x16xf32, #tpu.memory_space<vmem>>) attributes {dimension_semantics = [#tpu.dimension_semantics<parallel>, #tpu.dimension_semantics<parallel>, #tpu.dimension_semantics<arbitrary>], iteration_bounds = array<i64: 2, 1, 1>, scalar_prefetch = 0 : i64, scratch_operands = 1 : i64, tpu.core_type = #tpu.core_type<tc>, window_params = [{transform_indices = @transform_0, window_bounds = array<i64: 64, 144>}, {transform_indices = @transform_1, window_bounds = array<i64: 144, 16>}, {transform_indices = @transform_2, window_bounds = array<i64: 1, 16>}, {transform_indices = @transform_3, window_bounds = array<i64: 64, 16>}]} {
    %c0_i32 = arith.constant 0 : i32
    %0 = arith.cmpi eq, %arg2, %c0_i32 : i32
    %1 = arith.extui %0 : i1 to i32
    %c0_i32_0 = arith.constant 0 : i32
    %2 = arith.cmpi ne, %1, %c0_i32_0 : i32
    scf.if %2 {
      %cst_10 = arith.constant 0.000000e+00 : f32
      %12 = vector.broadcast %cst_10 : f32 to vector<64x16xf32>
      %c0_11 = arith.constant 0 : index
      %c0_12 = arith.constant 0 : index
      %13 = vector.load %arg7[%c0_11, %c0_12] : memref<64x16xf32, #tpu.memory_space<vmem>>, vector<64x16xf32>
      tpu.vector_store %arg7[%c0_11, %c0_12], %12 {strides = array<i32>} : memref<64x16xf32, #tpu.memory_space<vmem>>, vector<64x16xf32>,
    } else {
    }
    %c0 = arith.constant 0 : index
    %c0_1 = arith.constant 0 : index
    %3 = vector.load %arg3[%c0, %c0_1] : memref<64x144xbf16, #tpu.memory_space<vmem>>, vector<64x144xbf16>
    %c0_2 = arith.constant 0 : index
    %c0_3 = arith.constant 0 : index
    %4 = vector.load %arg7[%c0_2, %c0_3] : memref<64x16xf32, #tpu.memory_space<vmem>>, vector<64x16xf32>
    %c0_4 = arith.constant 0 : index
    %c0_5 = arith.constant 0 : index
    %5 = vector.load %arg4[%c0_4, %c0_5] : memref<144x16xbf16, #tpu.memory_space<vmem>>, vector<144x16xbf16>
    %cst = arith.constant dense<0.000000e+00> : vector<64x16xf32>
    %6 = tpu.matmul %3, %5, %cst {dimension_numbers = #tpu.dot_dimension_numbers<[1], [0], [0], [1], [0, 0, 1, 1], [], []>} : vector<64x144xbf16>, vector<144x16xbf16>, vector<64x16xf32> -> vector<64x16xf32>
    %7 = arith.addf %4, %6 : vector<64x16xf32>
    %c0_6 = arith.constant 0 : index
    %c0_7 = arith.constant 0 : index
    %8 = vector.load %arg7[%c0_6, %c0_7] : memref<64x16xf32, #tpu.memory_space<vmem>>, vector<64x16xf32>
    tpu.vector_store %arg7[%c0_6, %c0_7], %7 {strides = array<i32>} : memref<64x16xf32, #tpu.memory_space<vmem>>, vector<64x16xf32>,
    %c0_i32_8 = arith.constant 0 : i32
    %9 = arith.cmpi eq, %arg2, %c0_i32_8 : i32
    %10 = arith.extui %9 : i1 to i32
    %c0_i32_9 = arith.constant 0 : i32
    %11 = arith.cmpi ne, %10, %c0_i32_9 : i32
    scf.if %11 {
      %c0_10 = arith.constant 0 : index
      %c0_11 = arith.constant 0 : index
      %12 = vector.load %arg7[%c0_10, %c0_11] : memref<64x16xf32, #tpu.memory_space<vmem>>, vector<64x16xf32>
      %c0_12 = arith.constant 0 : index
      %c0_13 = arith.constant 0 : index
      %13 = vector.load %arg5[%c0_12, %c0_13] : memref<1x16xf32, #tpu.memory_space<vmem>>, vector<1x16xf32>
      %14 = vector.broadcast %13 : vector<1x16xf32> to vector<64x16xf32>
      %15 = arith.addf %12, %14 : vector<64x16xf32>
      %16 = arith.truncf %15 : vector<64x16xf32> to vector<64x16xbf16>
      %c0_14 = arith.constant 0 : index
      %c0_15 = arith.constant 0 : index
      %17 = vector.load %arg6[%c0_14, %c0_15] : memref<64x16xbf16, #tpu.memory_space<vmem>>, vector<64x16xbf16>
      tpu.vector_store %arg6[%c0_14, %c0_15], %16 {strides = array<i32>} : memref<64x16xbf16, #tpu.memory_space<vmem>>, vector<64x16xbf16>,
    } else {
    }
    return
  }
  func.func @transform_0(%arg0: i32, %arg1: i32, %arg2: i32) -> (i32, i32) {
    %c0_i32 = arith.constant 0 : i32
    return %arg0, %arg2 : i32, i32
  }
  func.func @transform_1(%arg0: i32, %arg1: i32, %arg2: i32) -> (i32, i32) {
    %c0_i32 = arith.constant 0 : i32
    return %arg2, %arg1 : i32, i32
  }
  func.func @transform_2(%arg0: i32, %arg1: i32, %arg2: i32) -> (i32, i32) {
    %c0_i32 = arith.constant 0 : i32
    %c0_i32_0 = arith.constant 0 : i32
    return %c0_i32, %arg1 : i32, i32
  }
  func.func @transform_3(%arg0: i32, %arg1: i32, %arg2: i32) -> (i32, i32) {
    %c0_i32 = arith.constant 0 : i32
    return %arg0, %arg1 : i32, i32
  }
}

module attributes {stable_mosaic.version = 11 : i64} {
  func.func @_fused_conv_mm_kernel(%arg0: i32, %arg1: i32, %arg2: i32, %arg3: memref<64x32xf32, #tpu.memory_space<vmem>>, %arg4: memref<32x64xbf16, #tpu.memory_space<vmem>>, %arg5: memref<1x64xf32, #tpu.memory_space<vmem>>, %arg6: memref<64x64xbf16, #tpu.memory_space<vmem>>, %arg7: memref<64x64xf32, #tpu.memory_space<vmem>>) attributes {dimension_semantics = [#tpu.dimension_semantics<parallel>, #tpu.dimension_semantics<parallel>, #tpu.dimension_semantics<arbitrary>], iteration_bounds = array<i64: 2, 1, 1>, scalar_prefetch = 0 : i64, scratch_operands = 1 : i64, tpu.core_type = #tpu.core_type<tc>, window_params = [{transform_indices = @transform_0, window_bounds = array<i64: 64, 32>}, {transform_indices = @transform_1, window_bounds = array<i64: 32, 64>}, {transform_indices = @transform_2, window_bounds = array<i64: 1, 64>}, {transform_indices = @transform_3, window_bounds = array<i64: 64, 64>}]} {
    %c0_i32 = arith.constant 0 : i32
    %0 = arith.cmpi eq, %arg2, %c0_i32 : i32
    %1 = arith.extui %0 : i1 to i32
    %c0_i32_0 = arith.constant 0 : i32
    %2 = arith.cmpi ne, %1, %c0_i32_0 : i32
    scf.if %2 {
      %cst_10 = arith.constant 0.000000e+00 : f32
      %13 = vector.broadcast %cst_10 : f32 to vector<64x64xf32>
      %c0_11 = arith.constant 0 : index
      %c0_12 = arith.constant 0 : index
      %14 = vector.load %arg7[%c0_11, %c0_12] : memref<64x64xf32, #tpu.memory_space<vmem>>, vector<64x64xf32>
      tpu.vector_store %arg7[%c0_11, %c0_12], %13 {strides = array<i32>} : memref<64x64xf32, #tpu.memory_space<vmem>>, vector<64x64xf32>,
    } else {
    }
    %c0 = arith.constant 0 : index
    %c0_1 = arith.constant 0 : index
    %3 = vector.load %arg3[%c0, %c0_1] : memref<64x32xf32, #tpu.memory_space<vmem>>, vector<64x32xf32>
    %4 = arith.truncf %3 : vector<64x32xf32> to vector<64x32xbf16>
    %c0_2 = arith.constant 0 : index
    %c0_3 = arith.constant 0 : index
    %5 = vector.load %arg7[%c0_2, %c0_3] : memref<64x64xf32, #tpu.memory_space<vmem>>, vector<64x64xf32>
    %c0_4 = arith.constant 0 : index
    %c0_5 = arith.constant 0 : index
    %6 = vector.load %arg4[%c0_4, %c0_5] : memref<32x64xbf16, #tpu.memory_space<vmem>>, vector<32x64xbf16>
    %cst = arith.constant dense<0.000000e+00> : vector<64x64xf32>
    %7 = tpu.matmul %4, %6, %cst {dimension_numbers = #tpu.dot_dimension_numbers<[1], [0], [0], [1], [0, 0, 1, 1], [], []>} : vector<64x32xbf16>, vector<32x64xbf16>, vector<64x64xf32> -> vector<64x64xf32>
    %8 = arith.addf %5, %7 : vector<64x64xf32>
    %c0_6 = arith.constant 0 : index
    %c0_7 = arith.constant 0 : index
    %9 = vector.load %arg7[%c0_6, %c0_7] : memref<64x64xf32, #tpu.memory_space<vmem>>, vector<64x64xf32>
    tpu.vector_store %arg7[%c0_6, %c0_7], %8 {strides = array<i32>} : memref<64x64xf32, #tpu.memory_space<vmem>>, vector<64x64xf32>,
    %c0_i32_8 = arith.constant 0 : i32
    %10 = arith.cmpi eq, %arg2, %c0_i32_8 : i32
    %11 = arith.extui %10 : i1 to i32
    %c0_i32_9 = arith.constant 0 : i32
    %12 = arith.cmpi ne, %11, %c0_i32_9 : i32
    scf.if %12 {
      %c0_10 = arith.constant 0 : index
      %c0_11 = arith.constant 0 : index
      %13 = vector.load %arg7[%c0_10, %c0_11] : memref<64x64xf32, #tpu.memory_space<vmem>>, vector<64x64xf32>
      %c0_12 = arith.constant 0 : index
      %c0_13 = arith.constant 0 : index
      %14 = vector.load %arg5[%c0_12, %c0_13] : memref<1x64xf32, #tpu.memory_space<vmem>>, vector<1x64xf32>
      %15 = vector.broadcast %14 : vector<1x64xf32> to vector<64x64xf32>
      %16 = arith.addf %13, %15 : vector<64x64xf32>
      %17 = arith.truncf %16 : vector<64x64xf32> to vector<64x64xbf16>
      %c0_14 = arith.constant 0 : index
      %c0_15 = arith.constant 0 : index
      %18 = vector.load %arg6[%c0_14, %c0_15] : memref<64x64xbf16, #tpu.memory_space<vmem>>, vector<64x64xbf16>
      tpu.vector_store %arg6[%c0_14, %c0_15], %17 {strides = array<i32>} : memref<64x64xbf16, #tpu.memory_space<vmem>>, vector<64x64xbf16>,
    } else {
    }
    return
  }
  func.func @transform_0(%arg0: i32, %arg1: i32, %arg2: i32) -> (i32, i32) {
    %c0_i32 = arith.constant 0 : i32
    return %arg0, %arg2 : i32, i32
  }
  func.func @transform_1(%arg0: i32, %arg1: i32, %arg2: i32) -> (i32, i32) {
    %c0_i32 = arith.constant 0 : i32
    return %arg2, %arg1 : i32, i32
  }
  func.func @transform_2(%arg0: i32, %arg1: i32, %arg2: i32) -> (i32, i32) {
    %c0_i32 = arith.constant 0 : i32
    %c0_i32_0 = arith.constant 0 : i32
    return %c0_i32, %arg1 : i32, i32
  }
  func.func @transform_3(%arg0: i32, %arg1: i32, %arg2: i32) -> (i32, i32) {
    %c0_i32 = arith.constant 0 : i32
    return %arg0, %arg1 : i32, i32
  }
}

module attributes {stable_mosaic.version = 11 : i64} {
  func.func @_fused_conv_mm_kernel(%arg0: i32, %arg1: i32, %arg2: i32, %arg3: memref<64x16xbf16, #tpu.memory_space<vmem>>, %arg4: memref<16x64xbf16, #tpu.memory_space<vmem>>, %arg5: memref<1x64xf32, #tpu.memory_space<vmem>>, %arg6: memref<1x16xf32, #tpu.memory_space<vmem>>, %arg7: memref<1x16xf32, #tpu.memory_space<vmem>>, %arg8: memref<64x64xbf16, #tpu.memory_space<vmem>>, %arg9: memref<64x64xf32, #tpu.memory_space<vmem>>, %arg10: memref<64x64xf32, #tpu.memory_space<vmem>>) attributes {dimension_semantics = [#tpu.dimension_semantics<parallel>, #tpu.dimension_semantics<parallel>, #tpu.dimension_semantics<arbitrary>], iteration_bounds = array<i64: 2, 1, 1>, scalar_prefetch = 0 : i64, scratch_operands = 1 : i64, tpu.core_type = #tpu.core_type<tc>, window_params = [{transform_indices = @transform_0, window_bounds = array<i64: 64, 16>}, {transform_indices = @transform_1, window_bounds = array<i64: 16, 64>}, {transform_indices = @transform_2, window_bounds = array<i64: 1, 64>}, {transform_indices = @transform_3, window_bounds = array<i64: 1, 16>}, {transform_indices = @transform_4, window_bounds = array<i64: 1, 16>}, {transform_indices = @transform_5, window_bounds = array<i64: 64, 64>}, {transform_indices = @transform_6, window_bounds = array<i64: 64, 64>}]} {
    %c0_i32 = arith.constant 0 : i32
    %0 = arith.cmpi eq, %arg2, %c0_i32 : i32
    %1 = arith.extui %0 : i1 to i32
    %c0_i32_0 = arith.constant 0 : i32
    %2 = arith.cmpi ne, %1, %c0_i32_0 : i32
    scf.if %2 {
      %cst_15 = arith.constant 0.000000e+00 : f32
      %22 = vector.broadcast %cst_15 : f32 to vector<64x64xf32>
      %c0_16 = arith.constant 0 : index
      %c0_17 = arith.constant 0 : index
      %23 = vector.load %arg10[%c0_16, %c0_17] : memref<64x64xf32, #tpu.memory_space<vmem>>, vector<64x64xf32>
      tpu.vector_store %arg10[%c0_16, %c0_17], %22 {strides = array<i32>} : memref<64x64xf32, #tpu.memory_space<vmem>>, vector<64x64xf32>,
    } else {
    }
    %c0 = arith.constant 0 : index
    %c0_1 = arith.constant 0 : index
    %3 = vector.load %arg3[%c0, %c0_1] : memref<64x16xbf16, #tpu.memory_space<vmem>>, vector<64x16xbf16>
    %4 = arith.extf %3 : vector<64x16xbf16> to vector<64x16xf32>
    %c0_2 = arith.constant 0 : index
    %c0_3 = arith.constant 0 : index
    %5 = vector.load %arg6[%c0_2, %c0_3] : memref<1x16xf32, #tpu.memory_space<vmem>>, vector<1x16xf32>
    %6 = vector.broadcast %5 : vector<1x16xf32> to vector<64x16xf32>
    %7 = arith.mulf %4, %6 : vector<64x16xf32>
    %c0_4 = arith.constant 0 : index
    %c0_5 = arith.constant 0 : index
    %8 = vector.load %arg7[%c0_4, %c0_5] : memref<1x16xf32, #tpu.memory_space<vmem>>, vector<1x16xf32>
    %9 = vector.broadcast %8 : vector<1x16xf32> to vector<64x16xf32>
    %10 = arith.addf %7, %9 : vector<64x16xf32>
    %cst = arith.constant 0.000000e+00 : f32
    %11 = vector.broadcast %cst : f32 to vector<64x16xf32>
    %12 = arith.maximumf %10, %11 : vector<64x16xf32>
    %13 = arith.truncf %12 : vector<64x16xf32> to vector<64x16xbf16>
    %c0_6 = arith.constant 0 : index
    %c0_7 = arith.constant 0 : index
    %14 = vector.load %arg10[%c0_6, %c0_7] : memref<64x64xf32, #tpu.memory_space<vmem>>, vector<64x64xf32>
    %c0_8 = arith.constant 0 : index
    %c0_9 = arith.constant 0 : index
    %15 = vector.load %arg4[%c0_8, %c0_9] : memref<16x64xbf16, #tpu.memory_space<vmem>>, vector<16x64xbf16>
    %cst_10 = arith.constant dense<0.000000e+00> : vector<64x64xf32>
    %16 = tpu.matmul %13, %15, %cst_10 {dimension_numbers = #tpu.dot_dimension_numbers<[1], [0], [0], [1], [0, 0, 1, 1], [], []>} : vector<64x16xbf16>, vector<16x64xbf16>, vector<64x64xf32> -> vector<64x64xf32>
    %17 = arith.addf %14, %16 : vector<64x64xf32>
    %c0_11 = arith.constant 0 : index
    %c0_12 = arith.constant 0 : index
    %18 = vector.load %arg10[%c0_11, %c0_12] : memref<64x64xf32, #tpu.memory_space<vmem>>, vector<64x64xf32>
    tpu.vector_store %arg10[%c0_11, %c0_12], %17 {strides = array<i32>} : memref<64x64xf32, #tpu.memory_space<vmem>>, vector<64x64xf32>,
    %c0_i32_13 = arith.constant 0 : i32
    %19 = arith.cmpi eq, %arg2, %c0_i32_13 : i32
    %20 = arith.extui %19 : i1 to i32
    %c0_i32_14 = arith.constant 0 : i32
    %21 = arith.cmpi ne, %20, %c0_i32_14 : i32
    scf.if %21 {
      %c0_15 = arith.constant 0 : index
      %c0_16 = arith.constant 0 : index
      %22 = vector.load %arg10[%c0_15, %c0_16] : memref<64x64xf32, #tpu.memory_space<vmem>>, vector<64x64xf32>
      %c0_17 = arith.constant 0 : index
      %c0_18 = arith.constant 0 : index
      %23 = vector.load %arg5[%c0_17, %c0_18] : memref<1x64xf32, #tpu.memory_space<vmem>>, vector<1x64xf32>
      %24 = vector.broadcast %23 : vector<1x64xf32> to vector<64x64xf32>
      %25 = arith.addf %22, %24 : vector<64x64xf32>
      %c0_19 = arith.constant 0 : index
      %c0_20 = arith.constant 0 : index
      %26 = vector.load %arg8[%c0_19, %c0_20] : memref<64x64xbf16, #tpu.memory_space<vmem>>, vector<64x64xbf16>
      %27 = arith.extf %26 : vector<64x64xbf16> to vector<64x64xf32>
      %28 = arith.addf %25, %27 : vector<64x64xf32>
      %c0_21 = arith.constant 0 : index
      %c0_22 = arith.constant 0 : index
      %29 = vector.load %arg9[%c0_21, %c0_22] : memref<64x64xf32, #tpu.memory_space<vmem>>, vector<64x64xf32>
      tpu.vector_store %arg9[%c0_21, %c0_22], %28 {strides = array<i32>} : memref<64x64xf32, #tpu.memory_space<vmem>>, vector<64x64xf32>,
    } else {
    }
    return
  }
  func.func @transform_0(%arg0: i32, %arg1: i32, %arg2: i32) -> (i32, i32) {
    %c0_i32 = arith.constant 0 : i32
    return %arg0, %arg2 : i32, i32
  }
  func.func @transform_1(%arg0: i32, %arg1: i32, %arg2: i32) -> (i32, i32) {
    %c0_i32 = arith.constant 0 : i32
    return %arg2, %arg1 : i32, i32
  }
  func.func @transform_2(%arg0: i32, %arg1: i32, %arg2: i32) -> (i32, i32) {
    %c0_i32 = arith.constant 0 : i32
    %c0_i32_0 = arith.constant 0 : i32
    return %c0_i32, %arg1 : i32, i32
  }
  func.func @transform_3(%arg0: i32, %arg1: i32, %arg2: i32) -> (i32, i32) {
    %c0_i32 = arith.constant 0 : i32
    %c0_i32_0 = arith.constant 0 : i32
    return %c0_i32, %arg2 : i32, i32
  }
  func.func @transform_4(%arg0: i32, %arg1: i32, %arg2: i32) -> (i32, i32) {
    %c0_i32 = arith.constant 0 : i32
    %c0_i32_0 = arith.constant 0 : i32
    return %c0_i32, %arg2 : i32, i32
  }
  func.func @transform_5(%arg0: i32, %arg1: i32, %arg2: i32) -> (i32, i32) {
    %c0_i32 = arith.constant 0 : i32
    return %arg0, %arg1 : i32, i32
  }
  func.func @transform_6(%arg0: i32, %arg1: i32, %arg2: i32) -> (i32, i32) {
    %c0_i32 = arith.constant 0 : i32
    return %arg0, %arg1 : i32, i32
  }
}

</mosaic_0001>

<llo_original>
// kernel: preact_bottleneck_forward.4
$region0: #{preact_bottleneck_forward.4}
  #allocation0 [shape = 'u32[]', space=smem, size = 0x4, offset = 0x4, fixed_abs, tag = 'smem constant byte address 0x4 - core index']
  #allocation1 [shape = 'u32[72,128]{1,0:T(1,128)}', space=vmem, size = 0x9000, scoped, tag = 'internal scratch']
  #allocation2 [shape = 'f32[64,16]{1,0:T(8,128)}', space=vmem, size = 0x8000, scoped, tag = 'scratch operand']
  %s0 = inlined_call_operand.vmem [shape: f32[128,32], index: 0, kind: input, shape index: {}]
  %s1 = inlined_call_operand.vmem [shape: bf16[32,16], index: 1, kind: input, shape index: {}]
  %s2 = inlined_call_operand.vmem [shape: f32[1,16], index: 2, kind: input, shape index: {}]
  %s3 = inlined_call_operand.vmem [shape: f32[1,32], index: 3, kind: input, shape index: {}]
  %s4 = inlined_call_operand.vmem [shape: f32[1,32], index: 4, kind: input, shape index: {}]
  %s5 = inlined_call_operand.vmem [shape: bf16[128,16], index: 5, kind: output, shape index: {}]
  %s6 = sld [smem:[#allocation0]]
  $region61: #{preact_bottleneck_forward.4} parent=0
    _
  %s8 = ssub.s32 1, %s6
  %s9 = scalar_select 0, %s8, %s6
  loop: start=0, step=1, limit=4
  $region2: #{preact_bottleneck_forward.4} parent=0 // loop_pre_header
    _
  $region3: #{preact_bottleneck_forward.4} parent=0 // loop_header
    %s11 = sphi 0, %s15
    %p12 = scmp.ge.s32.totalorder %s11, 4
    %s18 = sphi 0, %s37
    %s19 = sphi 0, %s33
    %s20 = sphi 0, %s29
    %s21 = sphi 0, %s18
    %s22 = sphi 0, %s19
    %s23 = sphi 0, %s20
    %s24 = sphi 0, %s21
    %s25 = sphi 0, %s22
    %s26 = sphi 0, %s23
    %s42 = sphi 0, %s44
    %s45 = sphi 0, %s42
    %s46 = sphi 0, %s45
    %s62 = sphi 0, %s46
    %s70 = sphi 0, %s72
    %s73 = sphi 0, %s70
    %s74 = sphi 0, %s73
    %s90 = sphi 0, %s74
    %s96 = sphi 0, %s98
    %s99 = sphi 0, %s96
    %s100 = sphi 0, %s99
    %s116 = sphi 0, %s100
    %s122 = sphi 0, %s124
    %s125 = sphi 0, %s122
    %s126 = sphi 0, %s125
    %s142 = sphi 0, %s126
    %s148 = sphi 0, %s150
    %s151 = sphi 0, %s148
    %s152 = sphi 0, %s151
    %s168 = sphi 0, %s152
    %s176 = sphi 0, %s178
    %s179 = sphi 0, %s176
    %s180 = sphi 0, %s179
    %s196 = sphi 0, %s180
  $region4: #{preact_bottleneck_forward.4} parent=0 // loop_header_branch
    %14 = sbr.rel (%p12) target = $region8
  $region5: #{preact_bottleneck_forward.4} parent=0 // loop_body
    %s16 = ssub.s32 %s11, 1
    %s17 = ssub.s32 %s11, 2
    %s27 = sadd.s32 1, %s20
    %p28 = scmp.ge.s32.totalorder %s27, 1
    %s29 = scalar_select %p28, 0, %s27
    %s30 = sadd.s32 1, %s19
    %s31 = scalar_select %p28, %s30, %s19
    %p32 = scmp.ge.s32.totalorder %s31, 1
    %s33 = scalar_select %p32, 0, %s31
    %s34 = sadd.s32 1, %s18
    %s35 = scalar_select %p32, %s34, %s18
    %p36 = scmp.ge.s32.totalorder %s35, 2
    %s37 = scalar_select %p36, 0, %s35
    %s38 = ssub.s32 %s18, %s37
    %s39 = ssub.s32 %s20, %s29
    %s40 = sor.u32 %s38, %s39
    %p41 = scmp.eq.s32.totalorder %s40, 0
    %s43 = sadd.s32 %s42, 1
    %s44 = scalar_select %p41, %s42, %s43
    %p47 = pneg %p41
    %p48 = scmp.eq.s32.totalorder %s11, 1
    %p49 = por %p47, %p48
    %p50 = scmp.ne.s32.totalorder %s42, %s45
    %p51 = scmp.eq.s32.totalorder %s11, 0
    %p52 = por %p50, %p51
    %p53 = scmp.ne.s32.totalorder %s42, %s45
    %p54 = scmp.eq.s32.totalorder %s16, 1
    %p55 = por %p53, %p54
    %p56 = scmp.ne.s32.totalorder %s45, %s46
    %p57 = scmp.eq.s32.totalorder %s16, 0
    %p58 = por %p56, %p57
    %p59 = scmp.ne.s32.totalorder %s45, %s46
    %p60 = scmp.eq.s32.totalorder %s17, 1
    %p61 = por %p59, %p60
    %p63 = scmp.ne.s32.totalorder %s46, %s62
    %p64 = scmp.eq.s32.totalorder %s17, 0
    %p65 = por %p63, %p64
    %s66 = ssub.s32 %s20, %s29
    %s67 = ssub.s32 %s19, %s33
    %s68 = sor.u32 %s66, %s67
    %p69 = scmp.eq.s32.totalorder %s68, 0
    %s71 = sadd.s32 %s70, 1
    %s72 = scalar_select %p69, %s70, %s71
    %p75 = pneg %p69
    %p76 = scmp.eq.s32.totalorder %s11, 1
    %p77 = por %p75, %p76
    %p78 = scmp.ne.s32.totalorder %s70, %s73
    %p79 = scmp.eq.s32.totalorder %s11, 0
    %p80 = por %p78, %p79
    %p81 = scmp.ne.s32.totalorder %s70, %s73
    %p82 = scmp.eq.s32.totalorder %s16, 1
    %p83 = por %p81, %p82
    %p84 = scmp.ne.s32.totalorder %s73, %s74
    %p85 = scmp.eq.s32.totalorder %s16, 0
    %p86 = por %p84, %p85
    %p87 = scmp.ne.s32.totalorder %s73, %s74
    %p88 = scmp.eq.s32.totalorder %s17, 1
    %p89 = por %p87, %p88
    %p91 = scmp.ne.s32.totalorder %s74, %s90
    %p92 = scmp.eq.s32.totalorder %s17, 0
    %p93 = por %p91, %p92
    %s94 = ssub.s32 %s19, %s33
    %p95 = scmp.eq.s32.totalorder %s94, 0
    %s97 = sadd.s32 %s96, 1
    %s98 = scalar_select %p95, %s96, %s97
    %p101 = pneg %p95
    %p102 = scmp.eq.s32.totalorder %s11, 1
    %p103 = por %p101, %p102
    %p104 = scmp.ne.s32.totalorder %s96, %s99
    %p105 = scmp.eq.s32.totalorder %s11, 0
    %p106 = por %p104, %p105
    %p107 = scmp.ne.s32.totalorder %s96, %s99
    %p108 = scmp.eq.s32.totalorder %s16, 1
    %p109 = por %p107, %p108
    %p110 = scmp.ne.s32.totalorder %s99, %s100
    %p111 = scmp.eq.s32.totalorder %s16, 0
    %p112 = por %p110, %p111
    %p113 = scmp.ne.s32.totalorder %s99, %s100
    %p114 = scmp.eq.s32.totalorder %s17, 1
    %p115 = por %p113, %p114
    %p117 = scmp.ne.s32.totalorder %s100, %s116
    %p118 = scmp.eq.s32.totalorder %s17, 0
    %p119 = por %p117, %p118
    %s120 = ssub.s32 %s20, %s29
    %p121 = scmp.eq.s32.totalorder %s120, 0
    %s123 = sadd.s32 %s122, 1
    %s124 = scalar_select %p121, %s122, %s123
    %p127 = pneg %p121
    %p128 = scmp.eq.s32.totalorder %s11, 1
    %p129 = por %p127, %p128
    %p130 = scmp.ne.s32.totalorder %s122, %s125
    %p131 = scmp.eq.s32.totalorder %s11, 0
    %p132 = por %p130, %p131
    %p133 = scmp.ne.s32.totalorder %s122, %s125
    %p134 = scmp.eq.s32.totalorder %s16, 1
    %p135 = por %p133, %p134
    %p136 = scmp.ne.s32.totalorder %s125, %s126
    %p137 = scmp.eq.s32.totalorder %s16, 0
    %p138 = por %p136, %p137
    %p139 = scmp.ne.s32.totalorder %s125, %s126
    %p140 = scmp.eq.s32.totalorder %s17, 1
    %p141 = por %p139, %p140
    %p143 = scmp.ne.s32.totalorder %s126, %s142
    %p144 = scmp.eq.s32.totalorder %s17, 0
    %p145 = por %p143, %p144
    %s146 = ssub.s32 %s20, %s29
    %p147 = scmp.eq.s32.totalorder %s146, 0
    %s149 = sadd.s32 %s148, 1
    %s150 = scalar_select %p147, %s148, %s149
    %p153 = pneg %p147
    %p154 = scmp.eq.s32.totalorder %s11, 1
    %p155 = por %p153, %p154
    %p156 = scmp.ne.s32.totalorder %s148, %s151
    %p157 = scmp.eq.s32.totalorder %s11, 0
    %p158 = por %p156, %p157
    %p159 = scmp.ne.s32.totalorder %s148, %s151
    %p160 = scmp.eq.s32.totalorder %s16, 1
    %p161 = por %p159, %p160
    %p162 = scmp.ne.s32.totalorder %s151, %s152
    %p163 = scmp.eq.s32.totalorder %s16, 0
    %p164 = por %p162, %p163
    %p165 = scmp.ne.s32.totalorder %s151, %s152
    %p166 = scmp.eq.s32.totalorder %s17, 1
    %p167 = por %p165, %p166
    %p169 = scmp.ne.s32.totalorder %s152, %s168
    %p170 = scmp.eq.s32.totalorder %s17, 0
    %p171 = por %p169, %p170
    %s172 = ssub.s32 %s18, %s37
    %s173 = ssub.s32 %s19, %s33
    %s174 = sor.u32 %s172, %s173
    %p175 = scmp.eq.s32.totalorder %s174, 0
    %s177 = sadd.s32 %s176, 1
    %s178 = scalar_select %p175, %s176, %s177
    %p181 = pneg %p175
    %p182 = scmp.eq.s32.totalorder %s11, 1
    %p183 = por %p181, %p182
    %p184 = scmp.ne.s32.totalorder %s176, %s179
    %p185 = scmp.eq.s32.totalorder %s11, 0
    %p186 = por %p184, %p185
    %p187 = scmp.ne.s32.totalorder %s176, %s179
    %p188 = scmp.eq.s32.totalorder %s16, 1
    %p189 = por %p187, %p188
    %p190 = scmp.ne.s32.totalorder %s179, %s180
    %p191 = scmp.eq.s32.totalorder %s16, 0
    %p192 = por %p190, %p191
    %p193 = scmp.ne.s32.totalorder %s179, %s180
    %p194 = scmp.eq.s32.totalorder %s17, 1
    %p195 = por %p193, %p194
    %p197 = scmp.ne.s32.totalorder %s180, %s196
    %p198 = scmp.eq.s32.totalorder %s17, 0
    %p199 = por %p197, %p198
    %p200 = scmp.le.s32.totalorder 1, %s11
    %p201 = scmp.lt.s32.totalorder %s11, 3
    %p202 = pnand %p200, %p201
    %p203 = pneg %p202
    // Predicated region
    $region9: #{preact_bottleneck_forward.4} parent=5 // pred_check
      _
    $region10: #{preact_bottleneck_forward.4} parent=5 // pred_check_branch
      %205 = sbr.rel (%p202) target = $region12
    $region11: #{preact_bottleneck_forward.4} parent=5 // pred_region
      %s206 = ssub.s32 %s11, 1
      // Predicated region
      $region13: #{preact_bottleneck_forward.4} parent=11 // pred_check
        %p207 = pneg %p86
      $region14: #{preact_bottleneck_forward.4} parent=11 // pred_check_branch
        %209 = sbr.rel (%p207) target = $region16
      $region15: #{preact_bottleneck_forward.4} parent=11 // pred_region
        %s210 = smul.u32 4, %s23
        %p211 = scmp.lt.s32.totalorder %s210, 3
        %s212 = scalar_select %p211, %s210, 3
        %p213 = scmp.lt.s32.totalorder %s22, 0
        %s214 = scalar_select %p213, %s22, 0
        %s215 = sadd.s32 %s214, %s212
        %s216 = smul.addr %s215, 4
        %s217 = scalar_lea.vmem %s1, %s216
        %s218 = smul.u32 4, %s23
      $region16: #{preact_bottleneck_forward.4} parent=11 // pred_fallthru
        _
      // Predicated region
      $region17: #{preact_bottleneck_forward.4} parent=11 // pred_check
        %p219 = pneg %p112
      $region18: #{preact_bottleneck_forward.4} parent=11 // pred_check_branch
        %221 = sbr.rel (%p219) target = $region20
      $region19: #{preact_bottleneck_forward.4} parent=11 // pred_region
        %p222 = scmp.lt.s32.totalorder %s22, 0
        %s223 = scalar_select %p222, %s22, 0
        %s224 = scalar_lea.vmem %s2, %s223
      $region20: #{preact_bottleneck_forward.4} parent=11 // pred_fallthru
        _
      // Predicated region
      $region21: #{preact_bottleneck_forward.4} parent=11 // pred_check
        %p225 = pneg %p138
      $region22: #{preact_bottleneck_forward.4} parent=11 // pred_check_branch
        %227 = sbr.rel (%p225) target = $region24
      $region23: #{preact_bottleneck_forward.4} parent=11 // pred_region
        %p228 = scmp.lt.s32.totalorder %s23, 0
        %s229 = scalar_select %p228, %s23, 0
        %s230 = scalar_lea.vmem %s3, %s229
      $region24: #{preact_bottleneck_forward.4} parent=11 // pred_fallthru
        _
      // Predicated region
      $region25: #{preact_bottleneck_forward.4} parent=11 // pred_check
        %p231 = pneg %p164
      $region26: #{preact_bottleneck_forward.4} parent=11 // pred_check_branch
        %233 = sbr.rel (%p231) target = $region28
      $region27: #{preact_bottleneck_forward.4} parent=11 // pred_region
        %p234 = scmp.lt.s32.totalorder %s23, 0
        %s235 = scalar_select %p234, %s23, 0
        %s236 = scalar_lea.vmem %s4, %s235
      $region28: #{preact_bottleneck_forward.4} parent=11 // pred_fallthru
        _
    $region12: #{preact_bottleneck_forward.4} parent=5 // pred_fallthru
      _
    %p237 = scmp.lt.s32.totalorder %s11, 2
    // Predicated region
    $region29: #{preact_bottleneck_forward.4} parent=5 // pred_check
      %p238 = pneg %p237
    $region30: #{preact_bottleneck_forward.4} parent=5 // pred_check_branch
      %240 = sbr.rel (%p238) target = $region32
    $region31: #{preact_bottleneck_forward.4} parent=5 // pred_region
      // Predicated region
      $region33: #{preact_bottleneck_forward.4} parent=31 // pred_check
        %p241 = pneg %p52
      $region34: #{preact_bottleneck_forward.4} parent=31 // pred_check_branch
        %243 = sbr.rel (%p241) target = $region36
      $region35: #{preact_bottleneck_forward.4} parent=31 // pred_region
        %s244 = smul.u32 8, %s18
        %p245 = scmp.lt.s32.totalorder %s244, 15
        %s246 = scalar_select %p245, %s244, 15
        %p247 = scmp.lt.s32.totalorder %s20, 0
        %s248 = scalar_select %p247, %s20, 0
        %s249 = sadd.s32 %s248, %s246
        %s250 = smul.addr %s249, 8
        %s251 = scalar_lea.vmem %s0, %s250
        %s252 = smul.u32 8, %s18
      $region36: #{preact_bottleneck_forward.4} parent=31 // pred_fallthru
        _
    $region32: #{preact_bottleneck_forward.4} parent=5 // pred_fallthru
      _
    %p253 = scmp.le.s32.totalorder 1, %s11
    %p254 = scmp.lt.s32.totalorder %s11, 3
    %p255 = pnand %p253, %p254
    %p256 = pneg %p255
    // Predicated region
    $region37: #{preact_bottleneck_forward.4} parent=5 // pred_check
      _
    $region38: #{preact_bottleneck_forward.4} parent=5 // pred_check_branch
      %258 = sbr.rel (%p255) target = $region40
    $region39: #{preact_bottleneck_forward.4} parent=5 // pred_region
      %s259 = ssub.s32 %s11, 1
      %s260 = smul.u32 8, %s21
      %p261 = scmp.lt.s32.totalorder %s260, 15
      %s262 = scalar_select %p261, %s260, 15
      %p263 = scmp.lt.s32.totalorder %s23, 0
      %s264 = scalar_select %p263, %s23, 0
      %s265 = sadd.s32 %s264, %s262
      %s266 = smul.addr %s265, 8
      %s267 = scalar_lea.vmem %s0, %s266
      %p268 = pneg %p58
      %p269 = pneg %p55
      %s270 = smul.u32 4, %s23
      %p271 = scmp.lt.s32.totalorder %s270, 3
      %s272 = scalar_select %p271, %s270, 3
      %p273 = scmp.lt.s32.totalorder %s22, 0
      %s274 = scalar_select %p273, %s22, 0
      %s275 = sadd.s32 %s274, %s272
      %s276 = smul.addr %s275, 4
      %s277 = scalar_lea.vmem %s1, %s276
      %p278 = pneg %p86
      %p279 = pneg %p83
      %p280 = scmp.lt.s32.totalorder %s22, 0
      %s281 = scalar_select %p280, %s22, 0
      %s282 = scalar_lea.vmem %s2, %s281
      %p283 = pneg %p112
      %p284 = pneg %p109
      %p285 = scmp.lt.s32.totalorder %s23, 0
      %s286 = scalar_select %p285, %s23, 0
      %s287 = scalar_lea.vmem %s3, %s286
      %p288 = pneg %p138
      %p289 = pneg %p135
      %p290 = scmp.lt.s32.totalorder %s23, 0
      %s291 = scalar_select %p290, %s23, 0
      %s292 = scalar_lea.vmem %s4, %s291
      %p293 = pneg %p164
      %p294 = pneg %p161
      %p295 = pneg %p192
      %p296 = pneg %p189
      %s297 = smul.u32 8, %s21
      %p298 = scmp.lt.s32.totalorder %s297, 15
      %s299 = scalar_select %p298, %s297, 15
      %p300 = scmp.lt.s32.totalorder %s22, 0
      %s301 = scalar_select %p300, %s22, 0
      %s302 = sadd.s32 %s301, %s299
      %s303 = smul.addr %s302, 4
      %s304 = scalar_lea.vmem %s5, %s303
      %s305 = smul.u32 8, %s21
      %p306 = scmp.lt.s32.totalorder %s305, 15
      %s307 = scalar_select %p306, %s305, 15
      %p308 = scmp.lt.s32.totalorder %s23, 0
      %s309 = scalar_select %p308, %s23, 0
      %s310 = sadd.s32 %s309, %s307
      %s311 = smul.addr %s310, 8
      %s312 = scalar_lea.vmem %s0, %s311
      %s313 = smul.u32 8, %s21
      %s314 = smul.u32 4, %s23
      %p315 = scmp.lt.s32.totalorder %s314, 3
      %s316 = scalar_select %p315, %s314, 3
      %p317 = scmp.lt.s32.totalorder %s22, 0
      %s318 = scalar_select %p317, %s22, 0
      %s319 = sadd.s32 %s318, %s316
      %s320 = smul.addr %s319, 4
      %s321 = scalar_lea.vmem %s1, %s320
      %s322 = smul.u32 4, %s23
      %p323 = scmp.lt.s32.totalorder %s22, 0
      %s324 = scalar_select %p323, %s22, 0
      %s325 = scalar_lea.vmem %s2, %s324
      %p326 = scmp.lt.s32.totalorder %s23, 0
      %s327 = scalar_select %p326, %s23, 0
      %s328 = scalar_lea.vmem %s3, %s327
      %p329 = scmp.lt.s32.totalorder %s23, 0
      %s330 = scalar_select %p329, %s23, 0
      %s331 = scalar_lea.vmem %s4, %s330
      %s332 = smul.u32 8, %s21
      %p333 = scmp.lt.s32.totalorder %s332, 15
      %s334 = scalar_select %p333, %s332, 15
      %p335 = scmp.lt.s32.totalorder %s22, 0
      %s336 = scalar_select %p335, %s22, 0
      %s337 = sadd.s32 %s336, %s334
      %s338 = smul.addr %s337, 4
      %s339 = scalar_lea.vmem %s5, %s338
      %s340 = smul.u32 8, %s21
      %p342 = scmp.eq.s32.totalorder %s23, 0
      // Predicated region
      $region41: #{preact_bottleneck_forward.4} parent=39 // pred_check
        %p343 = pneg %p342
      $region42: #{preact_bottleneck_forward.4} parent=39 // pred_check_branch
        %345 = sbr.rel (%p343) target = $region44
      $region43: #{preact_bottleneck_forward.4} parent=39 // pred_region
        %vm346 = vcmask 130048
        %347 = vst.msk [vmem:[#allocation2] sm:$0xff] %vm346, 0.0
        %348 = vst.msk [vmem:[#allocation2 + $0x8] sm:$0xff] %vm346, 0.0
        %349 = vst.msk [vmem:[#allocation2 + $0x10] sm:$0xff] %vm346, 0.0
        %350 = vst.msk [vmem:[#allocation2 + $0x18] sm:$0xff] %vm346, 0.0
        %351 = vst.msk [vmem:[#allocation2 + $0x20] sm:$0xff] %vm346, 0.0
        %352 = vst.msk [vmem:[#allocation2 + $0x28] sm:$0xff] %vm346, 0.0
        %353 = vst.msk [vmem:[#allocation2 + $0x30] sm:$0xff] %vm346, 0.0
        %354 = vst.msk [vmem:[#allocation2 + $0x38] sm:$0xff] %vm346, 0.0
      $region44: #{preact_bottleneck_forward.4} parent=39 // pred_fallthru
        _
      %v355 = vld [vmem:[%s312] sm:$0xff]
      %v356 = vld [vmem:[%s312 + $0x8] sm:$0xff]
      %v357 = vld [vmem:[%s312 + $0x10] sm:$0xff]
      %v358 = vld [vmem:[%s312 + $0x18] sm:$0xff]
      %v359 = vld [vmem:[%s312 + $0x20] sm:$0xff]
      %v360 = vld [vmem:[%s312 + $0x28] sm:$0xff]
      %v361 = vld [vmem:[%s312 + $0x30] sm:$0xff]
      %v362 = vld [vmem:[%s312 + $0x38] sm:$0xff]
      %v363 = vld [vmem:[%s328] sm:$0x1]
      %v365 = vperm.slane %v363, 0
      %v367 = vmul.f32 %v355, %v365
      %v368 = vmul.f32 %v356, %v365
      %v369 = vmul.f32 %v357, %v365
      %v370 = vmul.f32 %v358, %v365
      %v371 = vmul.f32 %v359, %v365
      %v372 = vmul.f32 %v360, %v365
      %v373 = vmul.f32 %v361, %v365
      %v374 = vmul.f32 %v362, %v365
      %v375 = vld [vmem:[%s331] sm:$0x1]
      %v377 = vperm.slane %v375, 0
      %v379 = vadd.f32 %v367, %v377
      %v380 = vadd.f32 %v368, %v377
      %v381 = vadd.f32 %v369, %v377
      %v382 = vadd.f32 %v370, %v377
      %v383 = vadd.f32 %v371, %v377
      %v384 = vadd.f32 %v372, %v377
      %v385 = vadd.f32 %v373, %v377
      %v386 = vadd.f32 %v374, %v377
      %v387 = vmax.f32 %v379, 0.0
      %v388 = vmax.f32 %v380, 0.0
      %v389 = vmax.f32 %v381, 0.0
      %v390 = vmax.f32 %v382, 0.0
      %v391 = vmax.f32 %v383, 0.0
      %v392 = vmax.f32 %v384, 0.0
      %v393 = vmax.f32 %v385, 0.0
      %v394 = vmax.f32 %v386, 0.0
      %v395 = vpack.c.bf16 %v388, %v387
      %v396 = vpack.c.bf16 %v390, %v389
      %v397 = vpack.c.bf16 %v392, %v391
      %v398 = vpack.c.bf16 %v394, %v393
      %v399 = vld [vmem:[#allocation2] sm:$0xff]
      %v400 = vld [vmem:[#allocation2 + $0x8] sm:$0xff]
      %v401 = vld [vmem:[#allocation2 + $0x10] sm:$0xff]
      %v402 = vld [vmem:[#allocation2 + $0x18] sm:$0xff]
      %v403 = vld [vmem:[#allocation2 + $0x20] sm:$0xff]
      %v404 = vld [vmem:[#allocation2 + $0x28] sm:$0xff]
      %v405 = vld [vmem:[#allocation2 + $0x30] sm:$0xff]
      %v406 = vld [vmem:[#allocation2 + $0x38] sm:$0xff]
      %v407 = vld [vmem:[%s321] sm:$0xf]
      %v408 = vld [vmem:[%s321 + $0x4] sm:$0xf]
      %v409 = vld [vmem:[%s321 + $0x8] sm:$0xf]
      %v410 = vld [vmem:[%s321 + $0xc] sm:$0xf]
      %v415 = vunpack.c.l.b16 %v407
      %v416 = vunpack.c.l.b16 %v408
      %v417 = vunpack.c.l.b16 %v409
      %v418 = vunpack.c.l.b16 %v410
      %v419 = vpack.c.b16 %v416, %v415
      %v420 = vpack.c.b16 %v418, %v417
      %vm423 = vcmask 261120
      %v425 = vsel %vm423, %v395, 0
      %v428 = vsel %vm423, %v396, 0
      %v431 = vsel %vm423, %v397, 0
      %v434 = vsel %vm423, %v398, 0
      %436 = vmatpush.bf16.msra.mxu0 0
      %437 = vmatpush.bf16.msra.mxu0 0
      %438 = vmatpush.bf16.msra.mxu0 0
      %439 = vmatpush.bf16.msra.mxu0 0
      %440 = vmatpush.bf16.msra.mxu0 0
      %441 = vmatpush.bf16.msra.mxu0 0
      %442 = vmatpush.bf16.msra.mxu0 %v420
      %443 = vmatpush.bf16.msra.mxu0 %v419
      %444 = vmatmul.bf16.gmra.mxu0 %v425
      %v445 = vpop.f32.mrf.mxu0
      %v446 = vadd.f32 0.0, %v445
      %v447 = vpop.f32.mrf.mxu0
      %v448 = vadd.f32 0.0, %v447
      %449 = vmatmul.bf16.gmra.mxu0 %v428
      %v450 = vpop.f32.mrf.mxu0
      %v451 = vadd.f32 0.0, %v450
      %v452 = vpop.f32.mrf.mxu0
      %v453 = vadd.f32 0.0, %v452
      %454 = vmatmul.bf16.gmra.mxu0 %v431
      %v455 = vpop.f32.mrf.mxu0
      %v456 = vadd.f32 0.0, %v455
      %v457 = vpop.f32.mrf.mxu0
      %v458 = vadd.f32 0.0, %v457
      %459 = vmatmul.bf16.gmra.mxu0 %v434
      %v460 = vpop.f32.mrf.mxu0
      %v461 = vadd.f32 0.0, %v460
      %v462 = vpop.f32.mrf.mxu0
      %v463 = vadd.f32 0.0, %v462
      %464 = vdwg.mxu0
      %v465 = vadd.f32 %v399, %v446
      %v466 = vadd.f32 %v400, %v448
      %v467 = vadd.f32 %v401, %v451
      %v468 = vadd.f32 %v402, %v453
      %v469 = vadd.f32 %v403, %v456
      %v470 = vadd.f32 %v404, %v458
      %v471 = vadd.f32 %v405, %v461
      %v472 = vadd.f32 %v406, %v463
      %vm473 = vcmask 130048
      %474 = vst.msk [vmem:[#allocation2] sm:$0xff] %vm473, %v465
      %475 = vst.msk [vmem:[#allocation2 + $0x8] sm:$0xff] %vm473, %v466
      %476 = vst.msk [vmem:[#allocation2 + $0x10] sm:$0xff] %vm473, %v467
      %477 = vst.msk [vmem:[#allocation2 + $0x18] sm:$0xff] %vm473, %v468
      %478 = vst.msk [vmem:[#allocation2 + $0x20] sm:$0xff] %vm473, %v469
      %479 = vst.msk [vmem:[#allocation2 + $0x28] sm:$0xff] %vm473, %v470
      %480 = vst.msk [vmem:[#allocation2 + $0x30] sm:$0xff] %vm473, %v471
      %481 = vst.msk [vmem:[#allocation2 + $0x38] sm:$0xff] %vm473, %v472
      // Predicated region
      $region45: #{preact_bottleneck_forward.4} parent=39 // pred_check
        %p482 = pneg %p342
      $region46: #{preact_bottleneck_forward.4} parent=39 // pred_check_branch
        %484 = sbr.rel (%p482) target = $region48
      $region47: #{preact_bottleneck_forward.4} parent=39 // pred_region
        %v485 = vld [vmem:[#allocation2] sm:$0xff]
        %v486 = vld [vmem:[#allocation2 + $0x8] sm:$0xff]
        %v487 = vld [vmem:[#allocation2 + $0x10] sm:$0xff]
        %v488 = vld [vmem:[#allocation2 + $0x18] sm:$0xff]
        %v489 = vld [vmem:[#allocation2 + $0x20] sm:$0xff]
        %v490 = vld [vmem:[#allocation2 + $0x28] sm:$0xff]
        %v491 = vld [vmem:[#allocation2 + $0x30] sm:$0xff]
        %v492 = vld [vmem:[#allocation2 + $0x38] sm:$0xff]
        %v493 = vld [vmem:[%s325] sm:$0x1]
        %v495 = vperm.slane %v493, 0
        %v497 = vadd.f32 %v485, %v495
        %v498 = vadd.f32 %v486, %v495
        %v499 = vadd.f32 %v487, %v495
        %v500 = vadd.f32 %v488, %v495
        %v501 = vadd.f32 %v489, %v495
        %v502 = vadd.f32 %v490, %v495
        %v503 = vadd.f32 %v491, %v495
        %v504 = vadd.f32 %v492, %v495
        %v505 = vpack.c.bf16 %v497, %v497
        %v506 = vpack.c.bf16 %v498, %v498
        %v507 = vpack.c.bf16 %v499, %v499
        %v508 = vpack.c.bf16 %v500, %v500
        %v509 = vpack.c.bf16 %v501, %v501
        %v510 = vpack.c.bf16 %v502, %v502
        %v511 = vpack.c.bf16 %v503, %v503
        %v512 = vpack.c.bf16 %v504, %v504
        %vm513 = vcmask 125952
        %514 = vst.msk [vmem:[%s339] sm:$0xf] %vm513, %v505
        %515 = vst.msk [vmem:[%s339 + $0x4] sm:$0xf] %vm513, %v506
        %516 = vst.msk [vmem:[%s339 + $0x8] sm:$0xf] %vm513, %v507
        %517 = vst.msk [vmem:[%s339 + $0xc] sm:$0xf] %vm513, %v508
        %518 = vst.msk [vmem:[%s339 + $0x10] sm:$0xf] %vm513, %v509
        %519 = vst.msk [vmem:[%s339 + $0x14] sm:$0xf] %vm513, %v510
        %520 = vst.msk [vmem:[%s339 + $0x18] sm:$0xf] %vm513, %v511
        %521 = vst.msk [vmem:[%s339 + $0x1c] sm:$0xf] %vm513, %v512
      $region48: #{preact_bottleneck_forward.4} parent=39 // pred_fallthru
        _
      %s522 = smul.u32 8, %s21
      %p523 = scmp.lt.s32.totalorder %s522, 15
      %s524 = scalar_select %p523, %s522, 15
      %p525 = scmp.lt.s32.totalorder %s22, 0
      %s526 = scalar_select %p525, %s22, 0
      %s527 = sadd.s32 %s526, %s524
      %s528 = smul.addr %s527, 4
      %s529 = scalar_lea.vmem %s5, %s528
      // Predicated region
      $region49: #{preact_bottleneck_forward.4} parent=39 // pred_check
        %p530 = pneg %p189
      $region50: #{preact_bottleneck_forward.4} parent=39 // pred_check_branch
        %532 = sbr.rel (%p530) target = $region52
      $region51: #{preact_bottleneck_forward.4} parent=39 // pred_region
        %s533 = smul.u32 8, %s21
      $region52: #{preact_bottleneck_forward.4} parent=39 // pred_fallthru
        _
    $region40: #{preact_bottleneck_forward.4} parent=5 // pred_fallthru
      _
    %p534 = scmp.le.s32.totalorder 2, %s11
    // Predicated region
    $region53: #{preact_bottleneck_forward.4} parent=5 // pred_check
      %p535 = pneg %p534
    $region54: #{preact_bottleneck_forward.4} parent=5 // pred_check_branch
      %537 = sbr.rel (%p535) target = $region56
    $region55: #{preact_bottleneck_forward.4} parent=5 // pred_region
      %s538 = ssub.s32 %s11, 2
      // Predicated region
      $region57: #{preact_bottleneck_forward.4} parent=55 // pred_check
        %p539 = pneg %p195
      $region58: #{preact_bottleneck_forward.4} parent=55 // pred_check_branch
        %541 = sbr.rel (%p539) target = $region60
      $region59: #{preact_bottleneck_forward.4} parent=55 // pred_region
        %s542 = smul.u32 8, %s24
        %p543 = scmp.lt.s32.totalorder %s542, 15
        %s544 = scalar_select %p543, %s542, 15
        %p545 = scmp.lt.s32.totalorder %s25, 0
        %s546 = scalar_select %p545, %s25, 0
        %s547 = sadd.s32 %s546, %s544
        %s548 = smul.addr %s547, 4
        %s549 = scalar_lea.vmem %s5, %s548
      $region60: #{preact_bottleneck_forward.4} parent=55 // pred_fallthru
        _
    $region56: #{preact_bottleneck_forward.4} parent=5 // pred_fallthru
      _
  $region6: #{preact_bottleneck_forward.4} parent=0 // loop_footer
    %s15 = sadd.s32 1, %s11
  $region7: #{preact_bottleneck_forward.4} parent=0 // loop_footer_branch
    %10 = sbr.rel target = $region3
  $region8: #{preact_bottleneck_forward.4} parent=0 // loop_exit
    _

// kernel: preact_bottleneck_forward.5
$region0: #{preact_bottleneck_forward.5}
  #allocation0 [shape = 'u32[]', space=smem, size = 0x4, offset = 0x4, fixed_abs, tag = 'smem constant byte address 0x4 - core index']
  #allocation1 [shape = 'u32[72,128]{1,0:T(1,128)}', space=vmem, size = 0x9000, scoped, tag = 'internal scratch']
  #allocation2 [shape = 'f32[64,16]{1,0:T(8,128)}', space=vmem, size = 0x8000, scoped, tag = 'scratch operand']
  %s0 = inlined_call_operand.vmem [shape: bf16[128,144], index: 0, kind: input, shape index: {}]
  %s1 = inlined_call_operand.vmem [shape: bf16[144,16], index: 1, kind: input, shape index: {}]
  %s2 = inlined_call_operand.vmem [shape: f32[1,16], index: 2, kind: input, shape index: {}]
  %s3 = inlined_call_operand.vmem [shape: bf16[128,16], index: 3, kind: output, shape index: {}]
  %s4 = sld [smem:[#allocation0]]
  $region53: #{preact_bottleneck_forward.5} parent=0
    _
  %s6 = ssub.s32 1, %s4
  %s7 = scalar_select 0, %s6, %s4
  loop: start=0, step=1, limit=4
  $region2: #{preact_bottleneck_forward.5} parent=0 // loop_pre_header
    _
  $region3: #{preact_bottleneck_forward.5} parent=0 // loop_header
    %s9 = sphi 0, %s13
    %p10 = scmp.ge.s32.totalorder %s9, 4
    %s16 = sphi 0, %s35
    %s17 = sphi 0, %s31
    %s18 = sphi 0, %s27
    %s19 = sphi 0, %s16
    %s20 = sphi 0, %s17
    %s21 = sphi 0, %s18
    %s22 = sphi 0, %s19
    %s23 = sphi 0, %s20
    %s24 = sphi 0, %s21
    %s40 = sphi 0, %s42
    %s43 = sphi 0, %s40
    %s44 = sphi 0, %s43
    %s60 = sphi 0, %s44
    %s68 = sphi 0, %s70
    %s71 = sphi 0, %s68
    %s72 = sphi 0, %s71
    %s88 = sphi 0, %s72
    %s94 = sphi 0, %s96
    %s97 = sphi 0, %s94
    %s98 = sphi 0, %s97
    %s114 = sphi 0, %s98
    %s122 = sphi 0, %s124
    %s125 = sphi 0, %s122
    %s126 = sphi 0, %s125
    %s142 = sphi 0, %s126
  $region4: #{preact_bottleneck_forward.5} parent=0 // loop_header_branch
    %12 = sbr.rel (%p10) target = $region8
  $region5: #{preact_bottleneck_forward.5} parent=0 // loop_body
    %s14 = ssub.s32 %s9, 1
    %s15 = ssub.s32 %s9, 2
    %s25 = sadd.s32 1, %s18
    %p26 = scmp.ge.s32.totalorder %s25, 1
    %s27 = scalar_select %p26, 0, %s25
    %s28 = sadd.s32 1, %s17
    %s29 = scalar_select %p26, %s28, %s17
    %p30 = scmp.ge.s32.totalorder %s29, 1
    %s31 = scalar_select %p30, 0, %s29
    %s32 = sadd.s32 1, %s16
    %s33 = scalar_select %p30, %s32, %s16
    %p34 = scmp.ge.s32.totalorder %s33, 2
    %s35 = scalar_select %p34, 0, %s33
    %s36 = ssub.s32 %s16, %s35
    %s37 = ssub.s32 %s18, %s27
    %s38 = sor.u32 %s36, %s37
    %p39 = scmp.eq.s32.totalorder %s38, 0
    %s41 = sadd.s32 %s40, 1
    %s42 = scalar_select %p39, %s40, %s41
    %p45 = pneg %p39
    %p46 = scmp.eq.s32.totalorder %s9, 1
    %p47 = por %p45, %p46
    %p48 = scmp.ne.s32.totalorder %s40, %s43
    %p49 = scmp.eq.s32.totalorder %s9, 0
    %p50 = por %p48, %p49
    %p51 = scmp.ne.s32.totalorder %s40, %s43
    %p52 = scmp.eq.s32.totalorder %s14, 1
    %p53 = por %p51, %p52
    %p54 = scmp.ne.s32.totalorder %s43, %s44
    %p55 = scmp.eq.s32.totalorder %s14, 0
    %p56 = por %p54, %p55
    %p57 = scmp.ne.s32.totalorder %s43, %s44
    %p58 = scmp.eq.s32.totalorder %s15, 1
    %p59 = por %p57, %p58
    %p61 = scmp.ne.s32.totalorder %s44, %s60
    %p62 = scmp.eq.s32.totalorder %s15, 0
    %p63 = por %p61, %p62
    %s64 = ssub.s32 %s18, %s27
    %s65 = ssub.s32 %s17, %s31
    %s66 = sor.u32 %s64, %s65
    %p67 = scmp.eq.s32.totalorder %s66, 0
    %s69 = sadd.s32 %s68, 1
    %s70 = scalar_select %p67, %s68, %s69
    %p73 = pneg %p67
    %p74 = scmp.eq.s32.totalorder %s9, 1
    %p75 = por %p73, %p74
    %p76 = scmp.ne.s32.totalorder %s68, %s71
    %p77 = scmp.eq.s32.totalorder %s9, 0
    %p78 = por %p76, %p77
    %p79 = scmp.ne.s32.totalorder %s68, %s71
    %p80 = scmp.eq.s32.totalorder %s14, 1
    %p81 = por %p79, %p80
    %p82 = scmp.ne.s32.totalorder %s71, %s72
    %p83 = scmp.eq.s32.totalorder %s14, 0
    %p84 = por %p82, %p83
    %p85 = scmp.ne.s32.totalorder %s71, %s72
    %p86 = scmp.eq.s32.totalorder %s15, 1
    %p87 = por %p85, %p86
    %p89 = scmp.ne.s32.totalorder %s72, %s88
    %p90 = scmp.eq.s32.totalorder %s15, 0
    %p91 = por %p89, %p90
    %s92 = ssub.s32 %s17, %s31
    %p93 = scmp.eq.s32.totalorder %s92, 0
    %s95 = sadd.s32 %s94, 1
    %s96 = scalar_select %p93, %s94, %s95
    %p99 = pneg %p93
    %p100 = scmp.eq.s32.totalorder %s9, 1
    %p101 = por %p99, %p100
    %p102 = scmp.ne.s32.totalorder %s94, %s97
    %p103 = scmp.eq.s32.totalorder %s9, 0
    %p104 = por %p102, %p103
    %p105 = scmp.ne.s32.totalorder %s94, %s97
    %p106 = scmp.eq.s32.totalorder %s14, 1
    %p107 = por %p105, %p106
    %p108 = scmp.ne.s32.totalorder %s97, %s98
    %p109 = scmp.eq.s32.totalorder %s14, 0
    %p110 = por %p108, %p109
    %p111 = scmp.ne.s32.totalorder %s97, %s98
    %p112 = scmp.eq.s32.totalorder %s15, 1
    %p113 = por %p111, %p112
    %p115 = scmp.ne.s32.totalorder %s98, %s114
    %p116 = scmp.eq.s32.totalorder %s15, 0
    %p117 = por %p115, %p116
    %s118 = ssub.s32 %s16, %s35
    %s119 = ssub.s32 %s17, %s31
    %s120 = sor.u32 %s118, %s119
    %p121 = scmp.eq.s32.totalorder %s120, 0
    %s123 = sadd.s32 %s122, 1
    %s124 = scalar_select %p121, %s122, %s123
    %p127 = pneg %p121
    %p128 = scmp.eq.s32.totalorder %s9, 1
    %p129 = por %p127, %p128
    %p130 = scmp.ne.s32.totalorder %s122, %s125
    %p131 = scmp.eq.s32.totalorder %s9, 0
    %p132 = por %p130, %p131
    %p133 = scmp.ne.s32.totalorder %s122, %s125
    %p134 = scmp.eq.s32.totalorder %s14, 1
    %p135 = por %p133, %p134
    %p136 = scmp.ne.s32.totalorder %s125, %s126
    %p137 = scmp.eq.s32.totalorder %s14, 0
    %p138 = por %p136, %p137
    %p139 = scmp.ne.s32.totalorder %s125, %s126
    %p140 = scmp.eq.s32.totalorder %s15, 1
    %p141 = por %p139, %p140
    %p143 = scmp.ne.s32.totalorder %s126, %s142
    %p144 = scmp.eq.s32.totalorder %s15, 0
    %p145 = por %p143, %p144
    %p146 = scmp.le.s32.totalorder 1, %s9
    %p147 = scmp.lt.s32.totalorder %s9, 3
    %p148 = pnand %p146, %p147
    %p149 = pneg %p148
    // Predicated region
    $region9: #{preact_bottleneck_forward.5} parent=5 // pred_check
      _
    $region10: #{preact_bottleneck_forward.5} parent=5 // pred_check_branch
      %151 = sbr.rel (%p148) target = $region12
    $region11: #{preact_bottleneck_forward.5} parent=5 // pred_region
      %s152 = ssub.s32 %s9, 1
      // Predicated region
      $region13: #{preact_bottleneck_forward.5} parent=11 // pred_check
        %p153 = pneg %p84
      $region14: #{preact_bottleneck_forward.5} parent=11 // pred_check_branch
        %155 = sbr.rel (%p153) target = $region16
      $region15: #{preact_bottleneck_forward.5} parent=11 // pred_region
        %s156 = smul.u32 18, %s21
        %p157 = scmp.lt.s32.totalorder %s156, 17
        %s158 = scalar_select %p157, %s156, 17
        %p159 = scmp.lt.s32.totalorder %s20, 0
        %s160 = scalar_select %p159, %s20, 0
        %s161 = sadd.s32 %s160, %s158
        %s162 = smul.addr %s161, 4
        %s163 = scalar_lea.vmem %s1, %s162
        %s164 = smul.u32 18, %s21
      $region16: #{preact_bottleneck_forward.5} parent=11 // pred_fallthru
        _
      // Predicated region
      $region17: #{preact_bottleneck_forward.5} parent=11 // pred_check
        %p165 = pneg %p110
      $region18: #{preact_bottleneck_forward.5} parent=11 // pred_check_branch
        %167 = sbr.rel (%p165) target = $region20
      $region19: #{preact_bottleneck_forward.5} parent=11 // pred_region
        %p168 = scmp.lt.s32.totalorder %s20, 0
        %s169 = scalar_select %p168, %s20, 0
        %s170 = scalar_lea.vmem %s2, %s169
      $region20: #{preact_bottleneck_forward.5} parent=11 // pred_fallthru
        _
    $region12: #{preact_bottleneck_forward.5} parent=5 // pred_fallthru
      _
    %p171 = scmp.lt.s32.totalorder %s9, 2
    // Predicated region
    $region21: #{preact_bottleneck_forward.5} parent=5 // pred_check
      %p172 = pneg %p171
    $region22: #{preact_bottleneck_forward.5} parent=5 // pred_check_branch
      %174 = sbr.rel (%p172) target = $region24
    $region23: #{preact_bottleneck_forward.5} parent=5 // pred_region
      // Predicated region
      $region25: #{preact_bottleneck_forward.5} parent=23 // pred_check
        %p175 = pneg %p50
      $region26: #{preact_bottleneck_forward.5} parent=23 // pred_check_branch
        %177 = sbr.rel (%p175) target = $region28
      $region27: #{preact_bottleneck_forward.5} parent=23 // pred_region
        %s178 = smul.u32 8, %s16
        %s179 = smul.u32 2, %s18
        %p180 = scmp.lt.s32.totalorder %s178, 15
        %s181 = scalar_select %p180, %s178, 15
        %p182 = scmp.lt.s32.totalorder %s179, 1
        %s183 = scalar_select %p182, %s179, 1
        %s184 = smul.addr %s181, 2
        %s185 = sadd.s32 %s183, %s184
        %s186 = smul.addr %s185, 4
        %s187 = scalar_lea.vmem %s0, %s186
        %s188 = smul.u32 8, %s16
        %s189 = smul.u32 2, %s18
      $region28: #{preact_bottleneck_forward.5} parent=23 // pred_fallthru
        _
    $region24: #{preact_bottleneck_forward.5} parent=5 // pred_fallthru
      _
    %p190 = scmp.le.s32.totalorder 1, %s9
    %p191 = scmp.lt.s32.totalorder %s9, 3
    %p192 = pnand %p190, %p191
    %p193 = pneg %p192
    // Predicated region
    $region29: #{preact_bottleneck_forward.5} parent=5 // pred_check
      _
    $region30: #{preact_bottleneck_forward.5} parent=5 // pred_check_branch
      %195 = sbr.rel (%p192) target = $region32
    $region31: #{preact_bottleneck_forward.5} parent=5 // pred_region
      %s196 = ssub.s32 %s9, 1
      %s197 = smul.u32 8, %s19
      %s198 = smul.u32 2, %s21
      %p199 = scmp.lt.s32.totalorder %s197, 15
      %s200 = scalar_select %p199, %s197, 15
      %p201 = scmp.lt.s32.totalorder %s198, 1
      %s202 = scalar_select %p201, %s198, 1
      %s203 = smul.addr %s200, 2
      %s204 = sadd.s32 %s202, %s203
      %s205 = smul.addr %s204, 4
      %s206 = scalar_lea.vmem %s0, %s205
      %p207 = pneg %p56
      %p208 = pneg %p53
      %s209 = smul.u32 18, %s21
      %p210 = scmp.lt.s32.totalorder %s209, 17
      %s211 = scalar_select %p210, %s209, 17
      %p212 = scmp.lt.s32.totalorder %s20, 0
      %s213 = scalar_select %p212, %s20, 0
      %s214 = sadd.s32 %s213, %s211
      %s215 = smul.addr %s214, 4
      %s216 = scalar_lea.vmem %s1, %s215
      %p217 = pneg %p84
      %p218 = pneg %p81
      %p219 = scmp.lt.s32.totalorder %s20, 0
      %s220 = scalar_select %p219, %s20, 0
      %s221 = scalar_lea.vmem %s2, %s220
      %p222 = pneg %p110
      %p223 = pneg %p107
      %p224 = pneg %p138
      %p225 = pneg %p135
      %s226 = smul.u32 8, %s19
      %p227 = scmp.lt.s32.totalorder %s226, 15
      %s228 = scalar_select %p227, %s226, 15
      %p229 = scmp.lt.s32.totalorder %s20, 0
      %s230 = scalar_select %p229, %s20, 0
      %s231 = sadd.s32 %s230, %s228
      %s232 = smul.addr %s231, 4
      %s233 = scalar_lea.vmem %s3, %s232
      %s234 = smul.u32 8, %s19
      %s235 = smul.u32 2, %s21
      %p236 = scmp.lt.s32.totalorder %s234, 15
      %s237 = scalar_select %p236, %s234, 15
      %p238 = scmp.lt.s32.totalorder %s235, 1
      %s239 = scalar_select %p238, %s235, 1
      %s240 = smul.addr %s237, 2
      %s241 = sadd.s32 %s239, %s240
      %s242 = smul.addr %s241, 4
      %s243 = scalar_lea.vmem %s0, %s242
      %s244 = smul.u32 8, %s19
      %s245 = smul.u32 2, %s21
      %s246 = smul.u32 18, %s21
      %p247 = scmp.lt.s32.totalorder %s246, 17
      %s248 = scalar_select %p247, %s246, 17
      %p249 = scmp.lt.s32.totalorder %s20, 0
      %s250 = scalar_select %p249, %s20, 0
      %s251 = sadd.s32 %s250, %s248
      %s252 = smul.addr %s251, 4
      %s253 = scalar_lea.vmem %s1, %s252
      %s254 = smul.u32 18, %s21
      %p255 = scmp.lt.s32.totalorder %s20, 0
      %s256 = scalar_select %p255, %s20, 0
      %s257 = scalar_lea.vmem %s2, %s256
      %s258 = smul.u32 8, %s19
      %p259 = scmp.lt.s32.totalorder %s258, 15
      %s260 = scalar_select %p259, %s258, 15
      %p261 = scmp.lt.s32.totalorder %s20, 0
      %s262 = scalar_select %p261, %s20, 0
      %s263 = sadd.s32 %s262, %s260
      %s264 = smul.addr %s263, 4
      %s265 = scalar_lea.vmem %s3, %s264
      %s266 = smul.u32 8, %s19
      %p268 = scmp.eq.s32.totalorder %s21, 0
      // Predicated region
      $region33: #{preact_bottleneck_forward.5} parent=31 // pred_check
        %p269 = pneg %p268
      $region34: #{preact_bottleneck_forward.5} parent=31 // pred_check_branch
        %271 = sbr.rel (%p269) target = $region36
      $region35: #{preact_bottleneck_forward.5} parent=31 // pred_region
        %vm272 = vcmask 130048
        %273 = vst.msk [vmem:[#allocation2] sm:$0xff] %vm272, 0.0
        %274 = vst.msk [vmem:[#allocation2 + $0x8] sm:$0xff] %vm272, 0.0
        %275 = vst.msk [vmem:[#allocation2 + $0x10] sm:$0xff] %vm272, 0.0
        %276 = vst.msk [vmem:[#allocation2 + $0x18] sm:$0xff] %vm272, 0.0
        %277 = vst.msk [vmem:[#allocation2 + $0x20] sm:$0xff] %vm272, 0.0
        %278 = vst.msk [vmem:[#allocation2 + $0x28] sm:$0xff] %vm272, 0.0
        %279 = vst.msk [vmem:[#allocation2 + $0x30] sm:$0xff] %vm272, 0.0
        %280 = vst.msk [vmem:[#allocation2 + $0x38] sm:$0xff] %vm272, 0.0
      $region36: #{preact_bottleneck_forward.5} parent=31 // pred_fallthru
        _
      %v281 = vld [vmem:[%s243] sm:$0xff]
      %v282 = vld [vmem:[%s243 + $0x8] sm:$0xff]
      %v283 = vld [vmem:[%s243 + $0x10] sm:$0xff]
      %v284 = vld [vmem:[%s243 + $0x18] sm:$0xff]
      %v285 = vld [vmem:[%s243 + $0x20] sm:$0xff]
      %v286 = vld [vmem:[%s243 + $0x28] sm:$0xff]
      %v287 = vld [vmem:[%s243 + $0x30] sm:$0xff]
      %v288 = vld [vmem:[%s243 + $0x38] sm:$0xff]
      %v289 = vld [vmem:[#allocation2] sm:$0xff]
      %v290 = vld [vmem:[#allocation2 + $0x8] sm:$0xff]
      %v291 = vld [vmem:[#allocation2 + $0x10] sm:$0xff]
      %v292 = vld [vmem:[#allocation2 + $0x18] sm:$0xff]
      %v293 = vld [vmem:[#allocation2 + $0x20] sm:$0xff]
      %v294 = vld [vmem:[#allocation2 + $0x28] sm:$0xff]
      %v295 = vld [vmem:[#allocation2 + $0x30] sm:$0xff]
      %v296 = vld [vmem:[#allocation2 + $0x38] sm:$0xff]
      %v297 = vld [vmem:[%s253] sm:$0xf]
      %v298 = vld [vmem:[%s253 + $0x4] sm:$0xf]
      %v299 = vld [vmem:[%s253 + $0x8] sm:$0xf]
      %v300 = vld [vmem:[%s253 + $0xc] sm:$0xf]
      %v301 = vld [vmem:[%s253 + $0x10] sm:$0xf]
      %v302 = vld [vmem:[%s253 + $0x14] sm:$0xf]
      %v303 = vld [vmem:[%s253 + $0x18] sm:$0xf]
      %v304 = vld [vmem:[%s253 + $0x1c] sm:$0xf]
      %v305 = vld [vmem:[%s253 + $0x20] sm:$0xf]
      %v306 = vld [vmem:[%s253 + $0x24] sm:$0xf]
      %v307 = vld [vmem:[%s253 + $0x28] sm:$0xf]
      %v308 = vld [vmem:[%s253 + $0x2c] sm:$0xf]
      %v309 = vld [vmem:[%s253 + $0x30] sm:$0xf]
      %v310 = vld [vmem:[%s253 + $0x34] sm:$0xf]
      %v311 = vld [vmem:[%s253 + $0x38] sm:$0xf]
      %v312 = vld [vmem:[%s253 + $0x3c] sm:$0xf]
      %v313 = vld [vmem:[%s253 + $0x40] sm:$0xf]
      %v314 = vld [vmem:[%s253 + $0x44] sm:$0xf]
      %v323 = vunpack.c.l.b16 %v281
      %v324 = vunpack.c.h.b16 %v281
      %v325 = vunpack.c.l.b16 %v282
      %v326 = vunpack.c.h.b16 %v282
      %v327 = vunpack.c.l.b16 %v283
      %v328 = vunpack.c.h.b16 %v283
      %v329 = vunpack.c.l.b16 %v284
      %v330 = vunpack.c.h.b16 %v284
      %v331 = vunpack.c.l.b16 %v285
      %v332 = vunpack.c.h.b16 %v285
      %v333 = vunpack.c.l.b16 %v286
      %v334 = vunpack.c.h.b16 %v286
      %v335 = vunpack.c.l.b16 %v287
      %v336 = vunpack.c.h.b16 %v287
      %v337 = vunpack.c.l.b16 %v288
      %v338 = vunpack.c.h.b16 %v288
      %v339 = vpack.c.b16 %v325, %v323
      %v340 = vpack.c.b16 %v326, %v324
      %v341 = vpack.c.b16 %v329, %v327
      %v342 = vpack.c.b16 %v330, %v328
      %v343 = vpack.c.b16 %v333, %v331
      %v344 = vpack.c.b16 %v334, %v332
      %v345 = vpack.c.b16 %v337, %v335
      %v346 = vpack.c.b16 %v338, %v336
      %v369 = vunpack.c.l.b16 %v297
      %v370 = vunpack.c.l.b16 %v298
      %v371 = vunpack.c.l.b16 %v299
      %v372 = vunpack.c.l.b16 %v300
      %v373 = vunpack.c.l.b16 %v301
      %v374 = vunpack.c.l.b16 %v302
      %v375 = vunpack.c.l.b16 %v303
      %v376 = vunpack.c.l.b16 %v304
      %v377 = vunpack.c.l.b16 %v305
      %v378 = vunpack.c.l.b16 %v306
      %v379 = vunpack.c.l.b16 %v307
      %v380 = vunpack.c.l.b16 %v308
      %v381 = vunpack.c.l.b16 %v309
      %v382 = vunpack.c.l.b16 %v310
      %v383 = vunpack.c.l.b16 %v311
      %v384 = vunpack.c.l.b16 %v312
      %v385 = vunpack.c.l.b16 %v313
      %v386 = vunpack.c.l.b16 %v314
      %v387 = vpack.c.b16 %v370, %v369
      %v388 = vpack.c.b16 %v372, %v371
      %v389 = vpack.c.b16 %v374, %v373
      %v390 = vpack.c.b16 %v376, %v375
      %v391 = vpack.c.b16 %v378, %v377
      %v392 = vpack.c.b16 %v380, %v379
      %v393 = vpack.c.b16 %v382, %v381
      %v394 = vpack.c.b16 %v384, %v383
      %v395 = vpack.c.b16 %v386, %v385
      %vm405 = vcmask 130048
      %v407 = vsel %vm405, %v340, 0
      %v410 = vsel %vm405, %v342, 0
      %v413 = vsel %vm405, %v344, 0
      %v416 = vsel %vm405, %v346, 0
      %418 = vmatpush.bf16.msra.mxu0 %v394
      %419 = vmatpush.bf16.msra.mxu0 %v393
      %420 = vmatpush.bf16.msra.mxu0 %v392
      %421 = vmatpush.bf16.msra.mxu0 %v391
      %422 = vmatpush.bf16.msra.mxu0 %v390
      %423 = vmatpush.bf16.msra.mxu0 %v389
      %424 = vmatpush.bf16.msra.mxu0 %v388
      %425 = vmatpush.bf16.msra.mxu0 %v387
      %426 = vmatmul.bf16.gmra.mxu0 %v339
      %v427 = vpop.f32.mrf.mxu0
      %v428 = vadd.f32 0.0, %v427
      %v429 = vpop.f32.mrf.mxu0
      %v430 = vadd.f32 0.0, %v429
      %431 = vmatmul.bf16.gmra.mxu0 %v341
      %v432 = vpop.f32.mrf.mxu0
      %v433 = vadd.f32 0.0, %v432
      %v434 = vpop.f32.mrf.mxu0
      %v435 = vadd.f32 0.0, %v434
      %436 = vmatmul.bf16.gmra.mxu0 %v343
      %v437 = vpop.f32.mrf.mxu0
      %v438 = vadd.f32 0.0, %v437
      %v439 = vpop.f32.mrf.mxu0
      %v440 = vadd.f32 0.0, %v439
      %441 = vmatmul.bf16.gmra.mxu0 %v345
      %v442 = vpop.f32.mrf.mxu0
      %v443 = vadd.f32 0.0, %v442
      %v444 = vpop.f32.mrf.mxu0
      %v445 = vadd.f32 0.0, %v444
      %446 = vdwg.mxu0
      %447 = vmatpush.bf16.msra.mxu0 0
      %448 = vmatpush.bf16.msra.mxu0 0
      %449 = vmatpush.bf16.msra.mxu0 0
      %450 = vmatpush.bf16.msra.mxu0 0
      %451 = vmatpush.bf16.msra.mxu0 0
      %452 = vmatpush.bf16.msra.mxu0 0
      %453 = vmatpush.bf16.msra.mxu0 0
      %454 = vmatpush.bf16.msra.mxu0 %v395
      %455 = vmatmul.bf16.gmra.mxu0 %v407
      %v456 = vpop.f32.mrf.mxu0
      %v457 = vadd.f32 %v428, %v456
      %v458 = vpop.f32.mrf.mxu0
      %v459 = vadd.f32 %v430, %v458
      %460 = vmatmul.bf16.gmra.mxu0 %v410
      %v461 = vpop.f32.mrf.mxu0
      %v462 = vadd.f32 %v433, %v461
      %v463 = vpop.f32.mrf.mxu0
      %v464 = vadd.f32 %v435, %v463
      %465 = vmatmul.bf16.gmra.mxu0 %v413
      %v466 = vpop.f32.mrf.mxu0
      %v467 = vadd.f32 %v438, %v466
      %v468 = vpop.f32.mrf.mxu0
      %v469 = vadd.f32 %v440, %v468
      %470 = vmatmul.bf16.gmra.mxu0 %v416
      %v471 = vpop.f32.mrf.mxu0
      %v472 = vadd.f32 %v443, %v471
      %v473 = vpop.f32.mrf.mxu0
      %v474 = vadd.f32 %v445, %v473
      %475 = vdwg.mxu0
      %v476 = vadd.f32 %v289, %v457
      %v477 = vadd.f32 %v290, %v459
      %v478 = vadd.f32 %v291, %v462
      %v479 = vadd.f32 %v292, %v464
      %v480 = vadd.f32 %v293, %v467
      %v481 = vadd.f32 %v294, %v469
      %v482 = vadd.f32 %v295, %v472
      %v483 = vadd.f32 %v296, %v474
      %484 = vst.msk [vmem:[#allocation2] sm:$0xff] %vm405, %v476
      %485 = vst.msk [vmem:[#allocation2 + $0x8] sm:$0xff] %vm405, %v477
      %486 = vst.msk [vmem:[#allocation2 + $0x10] sm:$0xff] %vm405, %v478
      %487 = vst.msk [vmem:[#allocation2 + $0x18] sm:$0xff] %vm405, %v479
      %488 = vst.msk [vmem:[#allocation2 + $0x20] sm:$0xff] %vm405, %v480
      %489 = vst.msk [vmem:[#allocation2 + $0x28] sm:$0xff] %vm405, %v481
      %490 = vst.msk [vmem:[#allocation2 + $0x30] sm:$0xff] %vm405, %v482
      %491 = vst.msk [vmem:[#allocation2 + $0x38] sm:$0xff] %vm405, %v483
      // Predicated region
      $region37: #{preact_bottleneck_forward.5} parent=31 // pred_check
        %p492 = pneg %p268
      $region38: #{preact_bottleneck_forward.5} parent=31 // pred_check_branch
        %494 = sbr.rel (%p492) target = $region40
      $region39: #{preact_bottleneck_forward.5} parent=31 // pred_region
        %v495 = vld [vmem:[#allocation2] sm:$0xff]
        %v496 = vld [vmem:[#allocation2 + $0x8] sm:$0xff]
        %v497 = vld [vmem:[#allocation2 + $0x10] sm:$0xff]
        %v498 = vld [vmem:[#allocation2 + $0x18] sm:$0xff]
        %v499 = vld [vmem:[#allocation2 + $0x20] sm:$0xff]
        %v500 = vld [vmem:[#allocation2 + $0x28] sm:$0xff]
        %v501 = vld [vmem:[#allocation2 + $0x30] sm:$0xff]
        %v502 = vld [vmem:[#allocation2 + $0x38] sm:$0xff]
        %v503 = vld [vmem:[%s257] sm:$0x1]
        %v505 = vperm.slane %v503, 0
        %v507 = vadd.f32 %v495, %v505
        %v508 = vadd.f32 %v496, %v505
        %v509 = vadd.f32 %v497, %v505
        %v510 = vadd.f32 %v498, %v505
        %v511 = vadd.f32 %v499, %v505
        %v512 = vadd.f32 %v500, %v505
        %v513 = vadd.f32 %v501, %v505
        %v514 = vadd.f32 %v502, %v505
        %v515 = vpack.c.bf16 %v507, %v507
        %v516 = vpack.c.bf16 %v508, %v508
        %v517 = vpack.c.bf16 %v509, %v509
        %v518 = vpack.c.bf16 %v510, %v510
        %v519 = vpack.c.bf16 %v511, %v511
        %v520 = vpack.c.bf16 %v512, %v512
        %v521 = vpack.c.bf16 %v513, %v513
        %v522 = vpack.c.bf16 %v514, %v514
        %vm523 = vcmask 125952
        %524 = vst.msk [vmem:[%s265] sm:$0xf] %vm523, %v515
        %525 = vst.msk [vmem:[%s265 + $0x4] sm:$0xf] %vm523, %v516
        %526 = vst.msk [vmem:[%s265 + $0x8] sm:$0xf] %vm523, %v517
        %527 = vst.msk [vmem:[%s265 + $0xc] sm:$0xf] %vm523, %v518
        %528 = vst.msk [vmem:[%s265 + $0x10] sm:$0xf] %vm523, %v519
        %529 = vst.msk [vmem:[%s265 + $0x14] sm:$0xf] %vm523, %v520
        %530 = vst.msk [vmem:[%s265 + $0x18] sm:$0xf] %vm523, %v521
        %531 = vst.msk [vmem:[%s265 + $0x1c] sm:$0xf] %vm523, %v522
      $region40: #{preact_bottleneck_forward.5} parent=31 // pred_fallthru
        _
      %s532 = smul.u32 8, %s19
      %p533 = scmp.lt.s32.totalorder %s532, 15
      %s534 = scalar_select %p533, %s532, 15
      %p535 = scmp.lt.s32.totalorder %s20, 0
      %s536 = scalar_select %p535, %s20, 0
      %s537 = sadd.s32 %s536, %s534
      %s538 = smul.addr %s537, 4
      %s539 = scalar_lea.vmem %s3, %s538
      // Predicated region
      $region41: #{preact_bottleneck_forward.5} parent=31 // pred_check
        %p540 = pneg %p135
      $region42: #{preact_bottleneck_forward.5} parent=31 // pred_check_branch
        %542 = sbr.rel (%p540) target = $region44
      $region43: #{preact_bottleneck_forward.5} parent=31 // pred_region
        %s543 = smul.u32 8, %s19
      $region44: #{preact_bottleneck_forward.5} parent=31 // pred_fallthru
        _
    $region32: #{preact_bottleneck_forward.5} parent=5 // pred_fallthru
      _
    %p544 = scmp.le.s32.totalorder 2, %s9
    // Predicated region
    $region45: #{preact_bottleneck_forward.5} parent=5 // pred_check
      %p545 = pneg %p544
    $region46: #{preact_bottleneck_forward.5} parent=5 // pred_check_branch
      %547 = sbr.rel (%p545) target = $region48
    $region47: #{preact_bottleneck_forward.5} parent=5 // pred_region
      %s548 = ssub.s32 %s9, 2
      // Predicated region
      $region49: #{preact_bottleneck_forward.5} parent=47 // pred_check
        %p549 = pneg %p141
      $region50: #{preact_bottleneck_forward.5} parent=47 // pred_check_branch
        %551 = sbr.rel (%p549) target = $region52
      $region51: #{preact_bottleneck_forward.5} parent=47 // pred_region
        %s552 = smul.u32 8, %s22
        %p553 = scmp.lt.s32.totalorder %s552, 15
        %s554 = scalar_select %p553, %s552, 15
        %p555 = scmp.lt.s32.totalorder %s23, 0
        %s556 = scalar_select %p555, %s23, 0
        %s557 = sadd.s32 %s556, %s554
        %s558 = smul.addr %s557, 4
        %s559 = scalar_lea.vmem %s3, %s558
      $region52: #{preact_bottleneck_forward.5} parent=47 // pred_fallthru
        _
    $region48: #{preact_bottleneck_forward.5} parent=5 // pred_fallthru
      _
  $region6: #{preact_bottleneck_forward.5} parent=0 // loop_footer
    %s13 = sadd.s32 1, %s9
  $region7: #{preact_bottleneck_forward.5} parent=0 // loop_footer_branch
    %8 = sbr.rel target = $region3
  $region8: #{preact_bottleneck_forward.5} parent=0 // loop_exit
    _

// kernel: preact_bottleneck_forward.6
$region0: #{preact_bottleneck_forward.6}
  #allocation0 [shape = 'u32[]', space=smem, size = 0x4, offset = 0x4, fixed_abs, tag = 'smem constant byte address 0x4 - core index']
  #allocation1 [shape = 'u32[72,128]{1,0:T(1,128)}', space=vmem, size = 0x9000, scoped, tag = 'internal scratch']
  #allocation2 [shape = 'f32[64,64]{1,0:T(8,128)}', space=vmem, size = 0x8000, scoped, tag = 'scratch operand']
  %s0 = inlined_call_operand.vmem [shape: f32[128,32], index: 0, kind: input, shape index: {}]
  %s1 = inlined_call_operand.vmem [shape: bf16[32,64], index: 1, kind: input, shape index: {}]
  %s2 = inlined_call_operand.vmem [shape: f32[1,64], index: 2, kind: input, shape index: {}]
  %s3 = inlined_call_operand.vmem [shape: bf16[128,64], index: 3, kind: output, shape index: {}]
  %s4 = sld [smem:[#allocation0]]
  $region53: #{preact_bottleneck_forward.6} parent=0
    _
  %s6 = ssub.s32 1, %s4
  %s7 = scalar_select 0, %s6, %s4
  loop: start=0, step=1, limit=4
  $region2: #{preact_bottleneck_forward.6} parent=0 // loop_pre_header
    _
  $region3: #{preact_bottleneck_forward.6} parent=0 // loop_header
    %s9 = sphi 0, %s13
    %p10 = scmp.ge.s32.totalorder %s9, 4
    %s16 = sphi 0, %s35
    %s17 = sphi 0, %s31
    %s18 = sphi 0, %s27
    %s19 = sphi 0, %s16
    %s20 = sphi 0, %s17
    %s21 = sphi 0, %s18
    %s22 = sphi 0, %s19
    %s23 = sphi 0, %s20
    %s24 = sphi 0, %s21
    %s40 = sphi 0, %s42
    %s43 = sphi 0, %s40
    %s44 = sphi 0, %s43
    %s60 = sphi 0, %s44
    %s68 = sphi 0, %s70
    %s71 = sphi 0, %s68
    %s72 = sphi 0, %s71
    %s88 = sphi 0, %s72
    %s94 = sphi 0, %s96
    %s97 = sphi 0, %s94
    %s98 = sphi 0, %s97
    %s114 = sphi 0, %s98
    %s122 = sphi 0, %s124
    %s125 = sphi 0, %s122
    %s126 = sphi 0, %s125
    %s142 = sphi 0, %s126
  $region4: #{preact_bottleneck_forward.6} parent=0 // loop_header_branch
    %12 = sbr.rel (%p10) target = $region8
  $region5: #{preact_bottleneck_forward.6} parent=0 // loop_body
    %s14 = ssub.s32 %s9, 1
    %s15 = ssub.s32 %s9, 2
    %s25 = sadd.s32 1, %s18
    %p26 = scmp.ge.s32.totalorder %s25, 1
    %s27 = scalar_select %p26, 0, %s25
    %s28 = sadd.s32 1, %s17
    %s29 = scalar_select %p26, %s28, %s17
    %p30 = scmp.ge.s32.totalorder %s29, 1
    %s31 = scalar_select %p30, 0, %s29
    %s32 = sadd.s32 1, %s16
    %s33 = scalar_select %p30, %s32, %s16
    %p34 = scmp.ge.s32.totalorder %s33, 2
    %s35 = scalar_select %p34, 0, %s33
    %s36 = ssub.s32 %s16, %s35
    %s37 = ssub.s32 %s18, %s27
    %s38 = sor.u32 %s36, %s37
    %p39 = scmp.eq.s32.totalorder %s38, 0
    %s41 = sadd.s32 %s40, 1
    %s42 = scalar_select %p39, %s40, %s41
    %p45 = pneg %p39
    %p46 = scmp.eq.s32.totalorder %s9, 1
    %p47 = por %p45, %p46
    %p48 = scmp.ne.s32.totalorder %s40, %s43
    %p49 = scmp.eq.s32.totalorder %s9, 0
    %p50 = por %p48, %p49
    %p51 = scmp.ne.s32.totalorder %s40, %s43
    %p52 = scmp.eq.s32.totalorder %s14, 1
    %p53 = por %p51, %p52
    %p54 = scmp.ne.s32.totalorder %s43, %s44
    %p55 = scmp.eq.s32.totalorder %s14, 0
    %p56 = por %p54, %p55
    %p57 = scmp.ne.s32.totalorder %s43, %s44
    %p58 = scmp.eq.s32.totalorder %s15, 1
    %p59 = por %p57, %p58
    %p61 = scmp.ne.s32.totalorder %s44, %s60
    %p62 = scmp.eq.s32.totalorder %s15, 0
    %p63 = por %p61, %p62
    %s64 = ssub.s32 %s18, %s27
    %s65 = ssub.s32 %s17, %s31
    %s66 = sor.u32 %s64, %s65
    %p67 = scmp.eq.s32.totalorder %s66, 0
    %s69 = sadd.s32 %s68, 1
    %s70 = scalar_select %p67, %s68, %s69
    %p73 = pneg %p67
    %p74 = scmp.eq.s32.totalorder %s9, 1
    %p75 = por %p73, %p74
    %p76 = scmp.ne.s32.totalorder %s68, %s71
    %p77 = scmp.eq.s32.totalorder %s9, 0
    %p78 = por %p76, %p77
    %p79 = scmp.ne.s32.totalorder %s68, %s71
    %p80 = scmp.eq.s32.totalorder %s14, 1
    %p81 = por %p79, %p80
    %p82 = scmp.ne.s32.totalorder %s71, %s72
    %p83 = scmp.eq.s32.totalorder %s14, 0
    %p84 = por %p82, %p83
    %p85 = scmp.ne.s32.totalorder %s71, %s72
    %p86 = scmp.eq.s32.totalorder %s15, 1
    %p87 = por %p85, %p86
    %p89 = scmp.ne.s32.totalorder %s72, %s88
    %p90 = scmp.eq.s32.totalorder %s15, 0
    %p91 = por %p89, %p90
    %s92 = ssub.s32 %s17, %s31
    %p93 = scmp.eq.s32.totalorder %s92, 0
    %s95 = sadd.s32 %s94, 1
    %s96 = scalar_select %p93, %s94, %s95
    %p99 = pneg %p93
    %p100 = scmp.eq.s32.totalorder %s9, 1
    %p101 = por %p99, %p100
    %p102 = scmp.ne.s32.totalorder %s94, %s97
    %p103 = scmp.eq.s32.totalorder %s9, 0
    %p104 = por %p102, %p103
    %p105 = scmp.ne.s32.totalorder %s94, %s97
    %p106 = scmp.eq.s32.totalorder %s14, 1
    %p107 = por %p105, %p106
    %p108 = scmp.ne.s32.totalorder %s97, %s98
    %p109 = scmp.eq.s32.totalorder %s14, 0
    %p110 = por %p108, %p109
    %p111 = scmp.ne.s32.totalorder %s97, %s98
    %p112 = scmp.eq.s32.totalorder %s15, 1
    %p113 = por %p111, %p112
    %p115 = scmp.ne.s32.totalorder %s98, %s114
    %p116 = scmp.eq.s32.totalorder %s15, 0
    %p117 = por %p115, %p116
    %s118 = ssub.s32 %s16, %s35
    %s119 = ssub.s32 %s17, %s31
    %s120 = sor.u32 %s118, %s119
    %p121 = scmp.eq.s32.totalorder %s120, 0
    %s123 = sadd.s32 %s122, 1
    %s124 = scalar_select %p121, %s122, %s123
    %p127 = pneg %p121
    %p128 = scmp.eq.s32.totalorder %s9, 1
    %p129 = por %p127, %p128
    %p130 = scmp.ne.s32.totalorder %s122, %s125
    %p131 = scmp.eq.s32.totalorder %s9, 0
    %p132 = por %p130, %p131
    %p133 = scmp.ne.s32.totalorder %s122, %s125
    %p134 = scmp.eq.s32.totalorder %s14, 1
    %p135 = por %p133, %p134
    %p136 = scmp.ne.s32.totalorder %s125, %s126
    %p137 = scmp.eq.s32.totalorder %s14, 0
    %p138 = por %p136, %p137
    %p139 = scmp.ne.s32.totalorder %s125, %s126
    %p140 = scmp.eq.s32.totalorder %s15, 1
    %p141 = por %p139, %p140
    %p143 = scmp.ne.s32.totalorder %s126, %s142
    %p144 = scmp.eq.s32.totalorder %s15, 0
    %p145 = por %p143, %p144
    %p146 = scmp.le.s32.totalorder 1, %s9
    %p147 = scmp.lt.s32.totalorder %s9, 3
    %p148 = pnand %p146, %p147
    %p149 = pneg %p148
    // Predicated region
    $region9: #{preact_bottleneck_forward.6} parent=5 // pred_check
      _
    $region10: #{preact_bottleneck_forward.6} parent=5 // pred_check_branch
      %151 = sbr.rel (%p148) target = $region12
    $region11: #{preact_bottleneck_forward.6} parent=5 // pred_region
      %s152 = ssub.s32 %s9, 1
      // Predicated region
      $region13: #{preact_bottleneck_forward.6} parent=11 // pred_check
        %p153 = pneg %p84
      $region14: #{preact_bottleneck_forward.6} parent=11 // pred_check_branch
        %155 = sbr.rel (%p153) target = $region16
      $region15: #{preact_bottleneck_forward.6} parent=11 // pred_region
        %s156 = smul.u32 4, %s21
        %p157 = scmp.lt.s32.totalorder %s156, 3
        %s158 = scalar_select %p157, %s156, 3
        %p159 = scmp.lt.s32.totalorder %s20, 0
        %s160 = scalar_select %p159, %s20, 0
        %s161 = sadd.s32 %s160, %s158
        %s162 = smul.addr %s161, 4
        %s163 = scalar_lea.vmem %s1, %s162
        %s164 = smul.u32 4, %s21
      $region16: #{preact_bottleneck_forward.6} parent=11 // pred_fallthru
        _
      // Predicated region
      $region17: #{preact_bottleneck_forward.6} parent=11 // pred_check
        %p165 = pneg %p110
      $region18: #{preact_bottleneck_forward.6} parent=11 // pred_check_branch
        %167 = sbr.rel (%p165) target = $region20
      $region19: #{preact_bottleneck_forward.6} parent=11 // pred_region
        %p168 = scmp.lt.s32.totalorder %s20, 0
        %s169 = scalar_select %p168, %s20, 0
        %s170 = scalar_lea.vmem %s2, %s169
      $region20: #{preact_bottleneck_forward.6} parent=11 // pred_fallthru
        _
    $region12: #{preact_bottleneck_forward.6} parent=5 // pred_fallthru
      _
    %p171 = scmp.lt.s32.totalorder %s9, 2
    // Predicated region
    $region21: #{preact_bottleneck_forward.6} parent=5 // pred_check
      %p172 = pneg %p171
    $region22: #{preact_bottleneck_forward.6} parent=5 // pred_check_branch
      %174 = sbr.rel (%p172) target = $region24
    $region23: #{preact_bottleneck_forward.6} parent=5 // pred_region
      // Predicated region
      $region25: #{preact_bottleneck_forward.6} parent=23 // pred_check
        %p175 = pneg %p50
      $region26: #{preact_bottleneck_forward.6} parent=23 // pred_check_branch
        %177 = sbr.rel (%p175) target = $region28
      $region27: #{preact_bottleneck_forward.6} parent=23 // pred_region
        %s178 = smul.u32 8, %s16
        %p179 = scmp.lt.s32.totalorder %s178, 15
        %s180 = scalar_select %p179, %s178, 15
        %p181 = scmp.lt.s32.totalorder %s18, 0
        %s182 = scalar_select %p181, %s18, 0
        %s183 = sadd.s32 %s182, %s180
        %s184 = smul.addr %s183, 8
        %s185 = scalar_lea.vmem %s0, %s184
        %s186 = smul.u32 8, %s16
      $region28: #{preact_bottleneck_forward.6} parent=23 // pred_fallthru
        _
    $region24: #{preact_bottleneck_forward.6} parent=5 // pred_fallthru
      _
    %p187 = scmp.le.s32.totalorder 1, %s9
    %p188 = scmp.lt.s32.totalorder %s9, 3
    %p189 = pnand %p187, %p188
    %p190 = pneg %p189
    // Predicated region
    $region29: #{preact_bottleneck_forward.6} parent=5 // pred_check
      _
    $region30: #{preact_bottleneck_forward.6} parent=5 // pred_check_branch
      %192 = sbr.rel (%p189) target = $region32
    $region31: #{preact_bottleneck_forward.6} parent=5 // pred_region
      %s193 = ssub.s32 %s9, 1
      %s194 = smul.u32 8, %s19
      %p195 = scmp.lt.s32.totalorder %s194, 15
      %s196 = scalar_select %p195, %s194, 15
      %p197 = scmp.lt.s32.totalorder %s21, 0
      %s198 = scalar_select %p197, %s21, 0
      %s199 = sadd.s32 %s198, %s196
      %s200 = smul.addr %s199, 8
      %s201 = scalar_lea.vmem %s0, %s200
      %p202 = pneg %p56
      %p203 = pneg %p53
      %s204 = smul.u32 4, %s21
      %p205 = scmp.lt.s32.totalorder %s204, 3
      %s206 = scalar_select %p205, %s204, 3
      %p207 = scmp.lt.s32.totalorder %s20, 0
      %s208 = scalar_select %p207, %s20, 0
      %s209 = sadd.s32 %s208, %s206
      %s210 = smul.addr %s209, 4
      %s211 = scalar_lea.vmem %s1, %s210
      %p212 = pneg %p84
      %p213 = pneg %p81
      %p214 = scmp.lt.s32.totalorder %s20, 0
      %s215 = scalar_select %p214, %s20, 0
      %s216 = scalar_lea.vmem %s2, %s215
      %p217 = pneg %p110
      %p218 = pneg %p107
      %p219 = pneg %p138
      %p220 = pneg %p135
      %s221 = smul.u32 8, %s19
      %p222 = scmp.lt.s32.totalorder %s221, 15
      %s223 = scalar_select %p222, %s221, 15
      %p224 = scmp.lt.s32.totalorder %s20, 0
      %s225 = scalar_select %p224, %s20, 0
      %s226 = sadd.s32 %s225, %s223
      %s227 = smul.addr %s226, 4
      %s228 = scalar_lea.vmem %s3, %s227
      %s229 = smul.u32 8, %s19
      %p230 = scmp.lt.s32.totalorder %s229, 15
      %s231 = scalar_select %p230, %s229, 15
      %p232 = scmp.lt.s32.totalorder %s21, 0
      %s233 = scalar_select %p232, %s21, 0
      %s234 = sadd.s32 %s233, %s231
      %s235 = smul.addr %s234, 8
      %s236 = scalar_lea.vmem %s0, %s235
      %s237 = smul.u32 8, %s19
      %s238 = smul.u32 4, %s21
      %p239 = scmp.lt.s32.totalorder %s238, 3
      %s240 = scalar_select %p239, %s238, 3
      %p241 = scmp.lt.s32.totalorder %s20, 0
      %s242 = scalar_select %p241, %s20, 0
      %s243 = sadd.s32 %s242, %s240
      %s244 = smul.addr %s243, 4
      %s245 = scalar_lea.vmem %s1, %s244
      %s246 = smul.u32 4, %s21
      %p247 = scmp.lt.s32.totalorder %s20, 0
      %s248 = scalar_select %p247, %s20, 0
      %s249 = scalar_lea.vmem %s2, %s248
      %s250 = smul.u32 8, %s19
      %p251 = scmp.lt.s32.totalorder %s250, 15
      %s252 = scalar_select %p251, %s250, 15
      %p253 = scmp.lt.s32.totalorder %s20, 0
      %s254 = scalar_select %p253, %s20, 0
      %s255 = sadd.s32 %s254, %s252
      %s256 = smul.addr %s255, 4
      %s257 = scalar_lea.vmem %s3, %s256
      %s258 = smul.u32 8, %s19
      %p260 = scmp.eq.s32.totalorder %s21, 0
      // Predicated region
      $region33: #{preact_bottleneck_forward.6} parent=31 // pred_check
        %p261 = pneg %p260
      $region34: #{preact_bottleneck_forward.6} parent=31 // pred_check_branch
        %263 = sbr.rel (%p261) target = $region36
      $region35: #{preact_bottleneck_forward.6} parent=31 // pred_region
        %vm264 = vcmask 523264
        %265 = vst.msk [vmem:[#allocation2] sm:$0xff] %vm264, 0.0
        %266 = vst.msk [vmem:[#allocation2 + $0x8] sm:$0xff] %vm264, 0.0
        %267 = vst.msk [vmem:[#allocation2 + $0x10] sm:$0xff] %vm264, 0.0
        %268 = vst.msk [vmem:[#allocation2 + $0x18] sm:$0xff] %vm264, 0.0
        %269 = vst.msk [vmem:[#allocation2 + $0x20] sm:$0xff] %vm264, 0.0
        %270 = vst.msk [vmem:[#allocation2 + $0x28] sm:$0xff] %vm264, 0.0
        %271 = vst.msk [vmem:[#allocation2 + $0x30] sm:$0xff] %vm264, 0.0
        %272 = vst.msk [vmem:[#allocation2 + $0x38] sm:$0xff] %vm264, 0.0
      $region36: #{preact_bottleneck_forward.6} parent=31 // pred_fallthru
        _
      %v273 = vld [vmem:[%s236] sm:$0xff]
      %v274 = vld [vmem:[%s236 + $0x8] sm:$0xff]
      %v275 = vld [vmem:[%s236 + $0x10] sm:$0xff]
      %v276 = vld [vmem:[%s236 + $0x18] sm:$0xff]
      %v277 = vld [vmem:[%s236 + $0x20] sm:$0xff]
      %v278 = vld [vmem:[%s236 + $0x28] sm:$0xff]
      %v279 = vld [vmem:[%s236 + $0x30] sm:$0xff]
      %v280 = vld [vmem:[%s236 + $0x38] sm:$0xff]
      %v281 = vpack.c.bf16 %v274, %v273
      %v282 = vpack.c.bf16 %v276, %v275
      %v283 = vpack.c.bf16 %v278, %v277
      %v284 = vpack.c.bf16 %v280, %v279
      %v285 = vld [vmem:[#allocation2] sm:$0xff]
      %v286 = vld [vmem:[#allocation2 + $0x8] sm:$0xff]
      %v287 = vld [vmem:[#allocation2 + $0x10] sm:$0xff]
      %v288 = vld [vmem:[#allocation2 + $0x18] sm:$0xff]
      %v289 = vld [vmem:[#allocation2 + $0x20] sm:$0xff]
      %v290 = vld [vmem:[#allocation2 + $0x28] sm:$0xff]
      %v291 = vld [vmem:[#allocation2 + $0x30] sm:$0xff]
      %v292 = vld [vmem:[#allocation2 + $0x38] sm:$0xff]
      %v293 = vld [vmem:[%s245] sm:$0xf]
      %v294 = vld [vmem:[%s245 + $0x4] sm:$0xf]
      %v295 = vld [vmem:[%s245 + $0x8] sm:$0xf]
      %v296 = vld [vmem:[%s245 + $0xc] sm:$0xf]
      %v301 = vunpack.c.l.b16 %v293
      %v302 = vunpack.c.l.b16 %v294
      %v303 = vunpack.c.l.b16 %v295
      %v304 = vunpack.c.l.b16 %v296
      %v305 = vpack.c.b16 %v302, %v301
      %v306 = vpack.c.b16 %v304, %v303
      %vm309 = vcmask 261120
      %v311 = vsel %vm309, %v281, 0
      %v314 = vsel %vm309, %v282, 0
      %v317 = vsel %vm309, %v283, 0
      %v320 = vsel %vm309, %v284, 0
      %322 = vmatpush.bf16.msra.mxu0 0
      %323 = vmatpush.bf16.msra.mxu0 0
      %324 = vmatpush.bf16.msra.mxu0 0
      %325 = vmatpush.bf16.msra.mxu0 0
      %326 = vmatpush.bf16.msra.mxu0 0
      %327 = vmatpush.bf16.msra.mxu0 0
      %328 = vmatpush.bf16.msra.mxu0 %v306
      %329 = vmatpush.bf16.msra.mxu0 %v305
      %330 = vmatmul.bf16.gmra.mxu0 %v311
      %v331 = vpop.f32.mrf.mxu0
      %v332 = vadd.f32 0.0, %v331
      %v333 = vpop.f32.mrf.mxu0
      %v334 = vadd.f32 0.0, %v333
      %335 = vmatmul.bf16.gmra.mxu0 %v314
      %v336 = vpop.f32.mrf.mxu0
      %v337 = vadd.f32 0.0, %v336
      %v338 = vpop.f32.mrf.mxu0
      %v339 = vadd.f32 0.0, %v338
      %340 = vmatmul.bf16.gmra.mxu0 %v317
      %v341 = vpop.f32.mrf.mxu0
      %v342 = vadd.f32 0.0, %v341
      %v343 = vpop.f32.mrf.mxu0
      %v344 = vadd.f32 0.0, %v343
      %345 = vmatmul.bf16.gmra.mxu0 %v320
      %v346 = vpop.f32.mrf.mxu0
      %v347 = vadd.f32 0.0, %v346
      %v348 = vpop.f32.mrf.mxu0
      %v349 = vadd.f32 0.0, %v348
      %350 = vdwg.mxu0
      %v351 = vadd.f32 %v285, %v332
      %v352 = vadd.f32 %v286, %v334
      %v353 = vadd.f32 %v287, %v337
      %v354 = vadd.f32 %v288, %v339
      %v355 = vadd.f32 %v289, %v342
      %v356 = vadd.f32 %v290, %v344
      %v357 = vadd.f32 %v291, %v347
      %v358 = vadd.f32 %v292, %v349
      %vm359 = vcmask 523264
      %360 = vst.msk [vmem:[#allocation2] sm:$0xff] %vm359, %v351
      %361 = vst.msk [vmem:[#allocation2 + $0x8] sm:$0xff] %vm359, %v352
      %362 = vst.msk [vmem:[#allocation2 + $0x10] sm:$0xff] %vm359, %v353
      %363 = vst.msk [vmem:[#allocation2 + $0x18] sm:$0xff] %vm359, %v354
      %364 = vst.msk [vmem:[#allocation2 + $0x20] sm:$0xff] %vm359, %v355
      %365 = vst.msk [vmem:[#allocation2 + $0x28] sm:$0xff] %vm359, %v356
      %366 = vst.msk [vmem:[#allocation2 + $0x30] sm:$0xff] %vm359, %v357
      %367 = vst.msk [vmem:[#allocation2 + $0x38] sm:$0xff] %vm359, %v358
      // Predicated region
      $region37: #{preact_bottleneck_forward.6} parent=31 // pred_check
        %p368 = pneg %p260
      $region38: #{preact_bottleneck_forward.6} parent=31 // pred_check_branch
        %370 = sbr.rel (%p368) target = $region40
      $region39: #{preact_bottleneck_forward.6} parent=31 // pred_region
        %v371 = vld [vmem:[#allocation2] sm:$0xff]
        %v372 = vld [vmem:[#allocation2 + $0x8] sm:$0xff]
        %v373 = vld [vmem:[#allocation2 + $0x10] sm:$0xff]
        %v374 = vld [vmem:[#allocation2 + $0x18] sm:$0xff]
        %v375 = vld [vmem:[#allocation2 + $0x20] sm:$0xff]
        %v376 = vld [vmem:[#allocation2 + $0x28] sm:$0xff]
        %v377 = vld [vmem:[#allocation2 + $0x30] sm:$0xff]
        %v378 = vld [vmem:[#allocation2 + $0x38] sm:$0xff]
        %v379 = vld [vmem:[%s249] sm:$0x1]
        %v381 = vperm.slane %v379, 0
        %v383 = vadd.f32 %v371, %v381
        %v384 = vadd.f32 %v372, %v381
        %v385 = vadd.f32 %v373, %v381
        %v386 = vadd.f32 %v374, %v381
        %v387 = vadd.f32 %v375, %v381
        %v388 = vadd.f32 %v376, %v381
        %v389 = vadd.f32 %v377, %v381
        %v390 = vadd.f32 %v378, %v381
        %v391 = vpack.c.bf16 %v383, %v383
        %v392 = vpack.c.bf16 %v384, %v384
        %v393 = vpack.c.bf16 %v385, %v385
        %v394 = vpack.c.bf16 %v386, %v386
        %v395 = vpack.c.bf16 %v387, %v387
        %v396 = vpack.c.bf16 %v388, %v388
        %v397 = vpack.c.bf16 %v389, %v389
        %v398 = vpack.c.bf16 %v390, %v390
        %vm399 = vcmask 519168
        %400 = vst.msk [vmem:[%s257] sm:$0xf] %vm399, %v391
        %401 = vst.msk [vmem:[%s257 + $0x4] sm:$0xf] %vm399, %v392
        %402 = vst.msk [vmem:[%s257 + $0x8] sm:$0xf] %vm399, %v393
        %403 = vst.msk [vmem:[%s257 + $0xc] sm:$0xf] %vm399, %v394
        %404 = vst.msk [vmem:[%s257 + $0x10] sm:$0xf] %vm399, %v395
        %405 = vst.msk [vmem:[%s257 + $0x14] sm:$0xf] %vm399, %v396
        %406 = vst.msk [vmem:[%s257 + $0x18] sm:$0xf] %vm399, %v397
        %407 = vst.msk [vmem:[%s257 + $0x1c] sm:$0xf] %vm399, %v398
      $region40: #{preact_bottleneck_forward.6} parent=31 // pred_fallthru
        _
      %s408 = smul.u32 8, %s19
      %p409 = scmp.lt.s32.totalorder %s408, 15
      %s410 = scalar_select %p409, %s408, 15
      %p411 = scmp.lt.s32.totalorder %s20, 0
      %s412 = scalar_select %p411, %s20, 0
      %s413 = sadd.s32 %s412, %s410
      %s414 = smul.addr %s413, 4
      %s415 = scalar_lea.vmem %s3, %s414
      // Predicated region
      $region41: #{preact_bottleneck_forward.6} parent=31 // pred_check
        %p416 = pneg %p135
      $region42: #{preact_bottleneck_forward.6} parent=31 // pred_check_branch
        %418 = sbr.rel (%p416) target = $region44
      $region43: #{preact_bottleneck_forward.6} parent=31 // pred_region
        %s419 = smul.u32 8, %s19
      $region44: #{preact_bottleneck_forward.6} parent=31 // pred_fallthru
        _
    $region32: #{preact_bottleneck_forward.6} parent=5 // pred_fallthru
      _
    %p420 = scmp.le.s32.totalorder 2, %s9
    // Predicated region
    $region45: #{preact_bottleneck_forward.6} parent=5 // pred_check
      %p421 = pneg %p420
    $region46: #{preact_bottleneck_forward.6} parent=5 // pred_check_branch
      %423 = sbr.rel (%p421) target = $region48
    $region47: #{preact_bottleneck_forward.6} parent=5 // pred_region
      %s424 = ssub.s32 %s9, 2
      // Predicated region
      $region49: #{preact_bottleneck_forward.6} parent=47 // pred_check
        %p425 = pneg %p141
      $region50: #{preact_bottleneck_forward.6} parent=47 // pred_check_branch
        %427 = sbr.rel (%p425) target = $region52
      $region51: #{preact_bottleneck_forward.6} parent=47 // pred_region
        %s428 = smul.u32 8, %s22
        %p429 = scmp.lt.s32.totalorder %s428, 15
        %s430 = scalar_select %p429, %s428, 15
        %p431 = scmp.lt.s32.totalorder %s23, 0
        %s432 = scalar_select %p431, %s23, 0
        %s433 = sadd.s32 %s432, %s430
        %s434 = smul.addr %s433, 4
        %s435 = scalar_lea.vmem %s3, %s434
      $region52: #{preact_bottleneck_forward.6} parent=47 // pred_fallthru
        _
    $region48: #{preact_bottleneck_forward.6} parent=5 // pred_fallthru
      _
  $region6: #{preact_bottleneck_forward.6} parent=0 // loop_footer
    %s13 = sadd.s32 1, %s9
  $region7: #{preact_bottleneck_forward.6} parent=0 // loop_footer_branch
    %8 = sbr.rel target = $region3
  $region8: #{preact_bottleneck_forward.6} parent=0 // loop_exit
    _

// kernel: preact_bottleneck_forward.7
$region0: #{preact_bottleneck_forward.7}
  #allocation0 [shape = 'u32[]', space=smem, size = 0x4, offset = 0x4, fixed_abs, tag = 'smem constant byte address 0x4 - core index']
  #allocation1 [shape = 'u32[72,128]{1,0:T(1,128)}', space=vmem, size = 0x9000, scoped, tag = 'internal scratch']
  #allocation2 [shape = 'f32[64,64]{1,0:T(8,128)}', space=vmem, size = 0x8000, scoped, tag = 'scratch operand']
  %s0 = inlined_call_operand.vmem [shape: bf16[128,16], index: 0, kind: input, shape index: {}]
  %s1 = inlined_call_operand.vmem [shape: bf16[16,64], index: 1, kind: input, shape index: {}]
  %s2 = inlined_call_operand.vmem [shape: f32[1,64], index: 2, kind: input, shape index: {}]
  %s3 = inlined_call_operand.vmem [shape: f32[1,16], index: 3, kind: input, shape index: {}]
  %s4 = inlined_call_operand.vmem [shape: f32[1,16], index: 4, kind: input, shape index: {}]
  %s5 = inlined_call_operand.vmem [shape: bf16[128,64], index: 5, kind: input, shape index: {}]
  %s6 = inlined_call_operand.hbm [shape: f32[128,64], index: 6, kind: output, shape index: {}]
  %s7 = sld [smem:[#allocation0]]
  $region65: #{preact_bottleneck_forward.7} parent=0
    _
  %s9 = ssub.s32 1, %s7
  %s10 = scalar_select 0, %s9, %s7
  $region1: #{preact_bottleneck_forward.7} parent=0
    #allocation3 [shape = 'u8[65536]{0}', space=vmem, size = 0x10000, scoped, tag = 'output window, operand 0']
    #allocation4 [shape = 's32[2]{0}', space=sflag, size = 0x8, scoped, tag = 'scoped memory for preact_bottleneck_forward.7']
    %11 = vsyncpa [#allocation4], 0
    %s12 = scalar_lea.sflag [#allocation4], 1
    %13 = vsyncpa %s12, 0
    loop: start=0, step=1, limit=4
    $region2: #{preact_bottleneck_forward.7} parent=1 // loop_pre_header
      _
    $region3: #{preact_bottleneck_forward.7} parent=1 // loop_header
      %s15 = sphi 0, %s19
      %p16 = scmp.ge.s32.totalorder %s15, 4
      %s22 = sphi 0, %s41
      %s23 = sphi 0, %s37
      %s24 = sphi 0, %s33
      %s25 = sphi 0, %s22
      %s26 = sphi 0, %s23
      %s27 = sphi 0, %s24
      %s28 = sphi 0, %s25
      %s29 = sphi 0, %s26
      %s30 = sphi 0, %s27
      %s46 = sphi 0, %s48
      %s49 = sphi 0, %s46
      %s50 = sphi 0, %s49
      %s66 = sphi 0, %s50
      %s74 = sphi 0, %s76
      %s77 = sphi 0, %s74
      %s78 = sphi 0, %s77
      %s94 = sphi 0, %s78
      %s100 = sphi 0, %s102
      %s103 = sphi 0, %s100
      %s104 = sphi 0, %s103
      %s120 = sphi 0, %s104
      %s126 = sphi 0, %s128
      %s129 = sphi 0, %s126
      %s130 = sphi 0, %s129
      %s146 = sphi 0, %s130
      %s152 = sphi 0, %s154
      %s155 = sphi 0, %s152
      %s156 = sphi 0, %s155
      %s172 = sphi 0, %s156
      %s180 = sphi 0, %s182
      %s183 = sphi 0, %s180
      %s184 = sphi 0, %s183
      %s200 = sphi 0, %s184
      %s208 = sphi 0, %s210
      %s211 = sphi 0, %s208
      %s212 = sphi 0, %s211
      %s228 = sphi 0, %s212
    $region4: #{preact_bottleneck_forward.7} parent=1 // loop_header_branch
      %18 = sbr.rel (%p16) target = $region8
    $region5: #{preact_bottleneck_forward.7} parent=1 // loop_body
      %s20 = ssub.s32 %s15, 1
      %s21 = ssub.s32 %s15, 2
      %s31 = sadd.s32 1, %s24
      %p32 = scmp.ge.s32.totalorder %s31, 1
      %s33 = scalar_select %p32, 0, %s31
      %s34 = sadd.s32 1, %s23
      %s35 = scalar_select %p32, %s34, %s23
      %p36 = scmp.ge.s32.totalorder %s35, 1
      %s37 = scalar_select %p36, 0, %s35
      %s38 = sadd.s32 1, %s22
      %s39 = scalar_select %p36, %s38, %s22
      %p40 = scmp.ge.s32.totalorder %s39, 2
      %s41 = scalar_select %p40, 0, %s39
      %s42 = ssub.s32 %s22, %s41
      %s43 = ssub.s32 %s24, %s33
      %s44 = sor.u32 %s42, %s43
      %p45 = scmp.eq.s32.totalorder %s44, 0
      %s47 = sadd.s32 %s46, 1
      %s48 = scalar_select %p45, %s46, %s47
      %p51 = pneg %p45
      %p52 = scmp.eq.s32.totalorder %s15, 1
      %p53 = por %p51, %p52
      %p54 = scmp.ne.s32.totalorder %s46, %s49
      %p55 = scmp.eq.s32.totalorder %s15, 0
      %p56 = por %p54, %p55
      %p57 = scmp.ne.s32.totalorder %s46, %s49
      %p58 = scmp.eq.s32.totalorder %s20, 1
      %p59 = por %p57, %p58
      %p60 = scmp.ne.s32.totalorder %s49, %s50
      %p61 = scmp.eq.s32.totalorder %s20, 0
      %p62 = por %p60, %p61
      %p63 = scmp.ne.s32.totalorder %s49, %s50
      %p64 = scmp.eq.s32.totalorder %s21, 1
      %p65 = por %p63, %p64
      %p67 = scmp.ne.s32.totalorder %s50, %s66
      %p68 = scmp.eq.s32.totalorder %s21, 0
      %p69 = por %p67, %p68
      %s70 = ssub.s32 %s24, %s33
      %s71 = ssub.s32 %s23, %s37
      %s72 = sor.u32 %s70, %s71
      %p73 = scmp.eq.s32.totalorder %s72, 0
      %s75 = sadd.s32 %s74, 1
      %s76 = scalar_select %p73, %s74, %s75
      %p79 = pneg %p73
      %p80 = scmp.eq.s32.totalorder %s15, 1
      %p81 = por %p79, %p80
      %p82 = scmp.ne.s32.totalorder %s74, %s77
      %p83 = scmp.eq.s32.totalorder %s15, 0
      %p84 = por %p82, %p83
      %p85 = scmp.ne.s32.totalorder %s74, %s77
      %p86 = scmp.eq.s32.totalorder %s20, 1
      %p87 = por %p85, %p86
      %p88 = scmp.ne.s32.totalorder %s77, %s78
      %p89 = scmp.eq.s32.totalorder %s20, 0
      %p90 = por %p88, %p89
      %p91 = scmp.ne.s32.totalorder %s77, %s78
      %p92 = scmp.eq.s32.totalorder %s21, 1
      %p93 = por %p91, %p92
      %p95 = scmp.ne.s32.totalorder %s78, %s94
      %p96 = scmp.eq.s32.totalorder %s21, 0
      %p97 = por %p95, %p96
      %s98 = ssub.s32 %s23, %s37
      %p99 = scmp.eq.s32.totalorder %s98, 0
      %s101 = sadd.s32 %s100, 1
      %s102 = scalar_select %p99, %s100, %s101
      %p105 = pneg %p99
      %p106 = scmp.eq.s32.totalorder %s15, 1
      %p107 = por %p105, %p106
      %p108 = scmp.ne.s32.totalorder %s100, %s103
      %p109 = scmp.eq.s32.totalorder %s15, 0
      %p110 = por %p108, %p109
      %p111 = scmp.ne.s32.totalorder %s100, %s103
      %p112 = scmp.eq.s32.totalorder %s20, 1
      %p113 = por %p111, %p112
      %p114 = scmp.ne.s32.totalorder %s103, %s104
      %p115 = scmp.eq.s32.totalorder %s20, 0
      %p116 = por %p114, %p115
      %p117 = scmp.ne.s32.totalorder %s103, %s104
      %p118 = scmp.eq.s32.totalorder %s21, 1
      %p119 = por %p117, %p118
      %p121 = scmp.ne.s32.totalorder %s104, %s120
      %p122 = scmp.eq.s32.totalorder %s21, 0
      %p123 = por %p121, %p122
      %s124 = ssub.s32 %s24, %s33
      %p125 = scmp.eq.s32.totalorder %s124, 0
      %s127 = sadd.s32 %s126, 1
      %s128 = scalar_select %p125, %s126, %s127
      %p131 = pneg %p125
      %p132 = scmp.eq.s32.totalorder %s15, 1
      %p133 = por %p131, %p132
      %p134 = scmp.ne.s32.totalorder %s126, %s129
      %p135 = scmp.eq.s32.totalorder %s15, 0
      %p136 = por %p134, %p135
      %p137 = scmp.ne.s32.totalorder %s126, %s129
      %p138 = scmp.eq.s32.totalorder %s20, 1
      %p139 = por %p137, %p138
      %p140 = scmp.ne.s32.totalorder %s129, %s130
      %p141 = scmp.eq.s32.totalorder %s20, 0
      %p142 = por %p140, %p141
      %p143 = scmp.ne.s32.totalorder %s129, %s130
      %p144 = scmp.eq.s32.totalorder %s21, 1
      %p145 = por %p143, %p144
      %p147 = scmp.ne.s32.totalorder %s130, %s146
      %p148 = scmp.eq.s32.totalorder %s21, 0
      %p149 = por %p147, %p148
      %s150 = ssub.s32 %s24, %s33
      %p151 = scmp.eq.s32.totalorder %s150, 0
      %s153 = sadd.s32 %s152, 1
      %s154 = scalar_select %p151, %s152, %s153
      %p157 = pneg %p151
      %p158 = scmp.eq.s32.totalorder %s15, 1
      %p159 = por %p157, %p158
      %p160 = scmp.ne.s32.totalorder %s152, %s155
      %p161 = scmp.eq.s32.totalorder %s15, 0
      %p162 = por %p160, %p161
      %p163 = scmp.ne.s32.totalorder %s152, %s155
      %p164 = scmp.eq.s32.totalorder %s20, 1
      %p165 = por %p163, %p164
      %p166 = scmp.ne.s32.totalorder %s155, %s156
      %p167 = scmp.eq.s32.totalorder %s20, 0
      %p168 = por %p166, %p167
      %p169 = scmp.ne.s32.totalorder %s155, %s156
      %p170 = scmp.eq.s32.totalorder %s21, 1
      %p171 = por %p169, %p170
      %p173 = scmp.ne.s32.totalorder %s156, %s172
      %p174 = scmp.eq.s32.totalorder %s21, 0
      %p175 = por %p173, %p174
      %s176 = ssub.s32 %s22, %s41
      %s177 = ssub.s32 %s23, %s37
      %s178 = sor.u32 %s176, %s177
      %p179 = scmp.eq.s32.totalorder %s178, 0
      %s181 = sadd.s32 %s180, 1
      %s182 = scalar_select %p179, %s180, %s181
      %p185 = pneg %p179
      %p186 = scmp.eq.s32.totalorder %s15, 1
      %p187 = por %p185, %p186
      %p188 = scmp.ne.s32.totalorder %s180, %s183
      %p189 = scmp.eq.s32.totalorder %s15, 0
      %p190 = por %p188, %p189
      %p191 = scmp.ne.s32.totalorder %s180, %s183
      %p192 = scmp.eq.s32.totalorder %s20, 1
      %p193 = por %p191, %p192
      %p194 = scmp.ne.s32.totalorder %s183, %s184
      %p195 = scmp.eq.s32.totalorder %s20, 0
      %p196 = por %p194, %p195
      %p197 = scmp.ne.s32.totalorder %s183, %s184
      %p198 = scmp.eq.s32.totalorder %s21, 1
      %p199 = por %p197, %p198
      %p201 = scmp.ne.s32.totalorder %s184, %s200
      %p202 = scmp.eq.s32.totalorder %s21, 0
      %p203 = por %p201, %p202
      %s204 = ssub.s32 %s22, %s41
      %s205 = ssub.s32 %s23, %s37
      %s206 = sor.u32 %s204, %s205
      %p207 = scmp.eq.s32.totalorder %s206, 0
      %s209 = sadd.s32 %s208, 1
      %s210 = scalar_select %p207, %s208, %s209
      %p213 = pneg %p207
      %p214 = scmp.eq.s32.totalorder %s15, 1
      %p215 = por %p213, %p214
      %p216 = scmp.ne.s32.totalorder %s208, %s211
      %p217 = scmp.eq.s32.totalorder %s15, 0
      %p218 = por %p216, %p217
      %p219 = scmp.ne.s32.totalorder %s208, %s211
      %p220 = scmp.eq.s32.totalorder %s20, 1
      %p221 = por %p219, %p220
      %p222 = scmp.ne.s32.totalorder %s211, %s212
      %p223 = scmp.eq.s32.totalorder %s20, 0
      %p224 = por %p222, %p223
      %p225 = scmp.ne.s32.totalorder %s211, %s212
      %p226 = scmp.eq.s32.totalorder %s21, 1
      %p227 = por %p225, %p226
      %p229 = scmp.ne.s32.totalorder %s212, %s228
      %p230 = scmp.eq.s32.totalorder %s21, 0
      %p231 = por %p229, %p230
      %p232 = scmp.le.s32.totalorder 1, %s15
      %p233 = scmp.lt.s32.totalorder %s15, 3
      %p234 = pnand %p232, %p233
      %p235 = pneg %p234
      // Predicated region
      $region9: #{preact_bottleneck_forward.7} parent=5 // pred_check
        _
      $region10: #{preact_bottleneck_forward.7} parent=5 // pred_check_branch
        %237 = sbr.rel (%p234) target = $region12
      $region11: #{preact_bottleneck_forward.7} parent=5 // pred_region
        %s238 = ssub.s32 %s15, 1
        // Predicated region
        $region13: #{preact_bottleneck_forward.7} parent=11 // pred_check
          %p239 = pneg %p90
        $region14: #{preact_bottleneck_forward.7} parent=11 // pred_check_branch
          %241 = sbr.rel (%p239) target = $region16
        $region15: #{preact_bottleneck_forward.7} parent=11 // pred_region
          %s242 = smul.u32 2, %s27
          %p243 = scmp.lt.s32.totalorder %s242, 1
          %s244 = scalar_select %p243, %s242, 1
          %p245 = scmp.lt.s32.totalorder %s26, 0
          %s246 = scalar_select %p245, %s26, 0
          %s247 = sadd.s32 %s246, %s244
          %s248 = smul.addr %s247, 4
          %s249 = scalar_lea.vmem %s1, %s248
          %s250 = smul.u32 2, %s27
        $region16: #{preact_bottleneck_forward.7} parent=11 // pred_fallthru
          _
        // Predicated region
        $region17: #{preact_bottleneck_forward.7} parent=11 // pred_check
          %p251 = pneg %p116
        $region18: #{preact_bottleneck_forward.7} parent=11 // pred_check_branch
          %253 = sbr.rel (%p251) target = $region20
        $region19: #{preact_bottleneck_forward.7} parent=11 // pred_region
          %p254 = scmp.lt.s32.totalorder %s26, 0
          %s255 = scalar_select %p254, %s26, 0
          %s256 = scalar_lea.vmem %s2, %s255
        $region20: #{preact_bottleneck_forward.7} parent=11 // pred_fallthru
          _
        // Predicated region
        $region21: #{preact_bottleneck_forward.7} parent=11 // pred_check
          %p257 = pneg %p142
        $region22: #{preact_bottleneck_forward.7} parent=11 // pred_check_branch
          %259 = sbr.rel (%p257) target = $region24
        $region23: #{preact_bottleneck_forward.7} parent=11 // pred_region
          %p260 = scmp.lt.s32.totalorder %s27, 0
          %s261 = scalar_select %p260, %s27, 0
          %s262 = scalar_lea.vmem %s3, %s261
        $region24: #{preact_bottleneck_forward.7} parent=11 // pred_fallthru
          _
        // Predicated region
        $region25: #{preact_bottleneck_forward.7} parent=11 // pred_check
          %p263 = pneg %p168
        $region26: #{preact_bottleneck_forward.7} parent=11 // pred_check_branch
          %265 = sbr.rel (%p263) target = $region28
        $region27: #{preact_bottleneck_forward.7} parent=11 // pred_region
          %p266 = scmp.lt.s32.totalorder %s27, 0
          %s267 = scalar_select %p266, %s27, 0
          %s268 = scalar_lea.vmem %s4, %s267
        $region28: #{preact_bottleneck_forward.7} parent=11 // pred_fallthru
          _
      $region12: #{preact_bottleneck_forward.7} parent=5 // pred_fallthru
        _
      %p269 = scmp.lt.s32.totalorder %s15, 2
      // Predicated region
      $region29: #{preact_bottleneck_forward.7} parent=5 // pred_check
        %p270 = pneg %p269
      $region30: #{preact_bottleneck_forward.7} parent=5 // pred_check_branch
        %272 = sbr.rel (%p270) target = $region32
      $region31: #{preact_bottleneck_forward.7} parent=5 // pred_region
        // Predicated region
        $region33: #{preact_bottleneck_forward.7} parent=31 // pred_check
          %p273 = pneg %p56
        $region34: #{preact_bottleneck_forward.7} parent=31 // pred_check_branch
          %275 = sbr.rel (%p273) target = $region36
        $region35: #{preact_bottleneck_forward.7} parent=31 // pred_region
          %s276 = smul.u32 8, %s22
          %p277 = scmp.lt.s32.totalorder %s276, 15
          %s278 = scalar_select %p277, %s276, 15
          %p279 = scmp.lt.s32.totalorder %s24, 0
          %s280 = scalar_select %p279, %s24, 0
          %s281 = sadd.s32 %s280, %s278
          %s282 = smul.addr %s281, 4
          %s283 = scalar_lea.vmem %s0, %s282
          %s284 = smul.u32 8, %s22
        $region36: #{preact_bottleneck_forward.7} parent=31 // pred_fallthru
          _
        // Predicated region
        $region37: #{preact_bottleneck_forward.7} parent=31 // pred_check
          %p285 = pneg %p190
        $region38: #{preact_bottleneck_forward.7} parent=31 // pred_check_branch
          %287 = sbr.rel (%p285) target = $region40
        $region39: #{preact_bottleneck_forward.7} parent=31 // pred_region
          %s288 = smul.u32 8, %s22
          %p289 = scmp.lt.s32.totalorder %s288, 15
          %s290 = scalar_select %p289, %s288, 15
          %p291 = scmp.lt.s32.totalorder %s23, 0
          %s292 = scalar_select %p291, %s23, 0
          %s293 = sadd.s32 %s292, %s290
          %s294 = smul.addr %s293, 4
          %s295 = scalar_lea.vmem %s5, %s294
          %s296 = smul.u32 8, %s22
        $region40: #{preact_bottleneck_forward.7} parent=31 // pred_fallthru
          _
      $region32: #{preact_bottleneck_forward.7} parent=5 // pred_fallthru
        _
      %p297 = scmp.le.s32.totalorder 1, %s15
      %p298 = scmp.lt.s32.totalorder %s15, 3
      %p299 = pnand %p297, %p298
      %p300 = pneg %p299
      // Predicated region
      $region41: #{preact_bottleneck_forward.7} parent=5 // pred_check
        _
      $region42: #{preact_bottleneck_forward.7} parent=5 // pred_check_branch
        %302 = sbr.rel (%p299) target = $region44
      $region43: #{preact_bottleneck_forward.7} parent=5 // pred_region
        %s303 = ssub.s32 %s15, 1
        %s304 = smul.u32 8, %s25
        %p305 = scmp.lt.s32.totalorder %s304, 15
        %s306 = scalar_select %p305, %s304, 15
        %p307 = scmp.lt.s32.totalorder %s27, 0
        %s308 = scalar_select %p307, %s27, 0
        %s309 = sadd.s32 %s308, %s306
        %s310 = smul.addr %s309, 4
        %s311 = scalar_lea.vmem %s0, %s310
        %p312 = pneg %p62
        %p313 = pneg %p59
        %s314 = smul.u32 2, %s27
        %p315 = scmp.lt.s32.totalorder %s314, 1
        %s316 = scalar_select %p315, %s314, 1
        %p317 = scmp.lt.s32.totalorder %s26, 0
        %s318 = scalar_select %p317, %s26, 0
        %s319 = sadd.s32 %s318, %s316
        %s320 = smul.addr %s319, 4
        %s321 = scalar_lea.vmem %s1, %s320
        %p322 = pneg %p90
        %p323 = pneg %p87
        %p324 = scmp.lt.s32.totalorder %s26, 0
        %s325 = scalar_select %p324, %s26, 0
        %s326 = scalar_lea.vmem %s2, %s325
        %p327 = pneg %p116
        %p328 = pneg %p113
        %p329 = scmp.lt.s32.totalorder %s27, 0
        %s330 = scalar_select %p329, %s27, 0
        %s331 = scalar_lea.vmem %s3, %s330
        %p332 = pneg %p142
        %p333 = pneg %p139
        %p334 = scmp.lt.s32.totalorder %s27, 0
        %s335 = scalar_select %p334, %s27, 0
        %s336 = scalar_lea.vmem %s4, %s335
        %p337 = pneg %p168
        %p338 = pneg %p165
        %s339 = smul.u32 8, %s25
        %p340 = scmp.lt.s32.totalorder %s339, 15
        %s341 = scalar_select %p340, %s339, 15
        %p342 = scmp.lt.s32.totalorder %s26, 0
        %s343 = scalar_select %p342, %s26, 0
        %s344 = sadd.s32 %s343, %s341
        %s345 = smul.addr %s344, 4
        %s346 = scalar_lea.vmem %s5, %s345
        %p347 = pneg %p196
        %p348 = pneg %p193
        %p349 = pneg %p224
        %p350 = pneg %p221
        %s351 = sand.u32 %s211, 1
        %s352 = scalar_lea.sflag [#allocation4], %s351
        %s353 = sand.u32 %s211, 1
        %s354 = smul.addr %s353, 64
        %s355 = scalar_lea.vmem [#allocation3], %s354
        %s356 = smul.u32 8, %s25
        %p357 = scmp.lt.s32.totalorder %s356, 15
        %s358 = scalar_select %p357, %s356, 15
        %p359 = scmp.lt.s32.totalorder %s27, 0
        %s360 = scalar_select %p359, %s27, 0
        %s361 = sadd.s32 %s360, %s358
        %s362 = smul.addr %s361, 4
        %s363 = scalar_lea.vmem %s0, %s362
        %s364 = smul.u32 8, %s25
        %s365 = smul.u32 2, %s27
        %p366 = scmp.lt.s32.totalorder %s365, 1
        %s367 = scalar_select %p366, %s365, 1
        %p368 = scmp.lt.s32.totalorder %s26, 0
        %s369 = scalar_select %p368, %s26, 0
        %s370 = sadd.s32 %s369, %s367
        %s371 = smul.addr %s370, 4
        %s372 = scalar_lea.vmem %s1, %s371
        %s373 = smul.u32 2, %s27
        %p374 = scmp.lt.s32.totalorder %s26, 0
        %s375 = scalar_select %p374, %s26, 0
        %s376 = scalar_lea.vmem %s2, %s375
        %p377 = scmp.lt.s32.totalorder %s27, 0
        %s378 = scalar_select %p377, %s27, 0
        %s379 = scalar_lea.vmem %s3, %s378
        %p380 = scmp.lt.s32.totalorder %s27, 0
        %s381 = scalar_select %p380, %s27, 0
        %s382 = scalar_lea.vmem %s4, %s381
        %s383 = smul.u32 8, %s25
        %p384 = scmp.lt.s32.totalorder %s383, 15
        %s385 = scalar_select %p384, %s383, 15
        %p386 = scmp.lt.s32.totalorder %s26, 0
        %s387 = scalar_select %p386, %s26, 0
        %s388 = sadd.s32 %s387, %s385
        %s389 = smul.addr %s388, 4
        %s390 = scalar_lea.vmem %s5, %s389
        %s391 = smul.u32 8, %s25
        %s392 = smul.u32 8, %s25
        %p394 = scmp.eq.s32.totalorder %s27, 0
        // Predicated region
        $region45: #{preact_bottleneck_forward.7} parent=43 // pred_check
          %p395 = pneg %p394
        $region46: #{preact_bottleneck_forward.7} parent=43 // pred_check_branch
          %397 = sbr.rel (%p395) target = $region48
        $region47: #{preact_bottleneck_forward.7} parent=43 // pred_region
          %vm398 = vcmask 523264
          %399 = vst.msk [vmem:[#allocation2] sm:$0xff] %vm398, 0.0
          %400 = vst.msk [vmem:[#allocation2 + $0x8] sm:$0xff] %vm398, 0.0
          %401 = vst.msk [vmem:[#allocation2 + $0x10] sm:$0xff] %vm398, 0.0
          %402 = vst.msk [vmem:[#allocation2 + $0x18] sm:$0xff] %vm398, 0.0
          %403 = vst.msk [vmem:[#allocation2 + $0x20] sm:$0xff] %vm398, 0.0
          %404 = vst.msk [vmem:[#allocation2 + $0x28] sm:$0xff] %vm398, 0.0
          %405 = vst.msk [vmem:[#allocation2 + $0x30] sm:$0xff] %vm398, 0.0
          %406 = vst.msk [vmem:[#allocation2 + $0x38] sm:$0xff] %vm398, 0.0
        $region48: #{preact_bottleneck_forward.7} parent=43 // pred_fallthru
          _
        %v407 = vld [vmem:[%s363] sm:$0xf]
        %v408 = vld [vmem:[%s363 + $0x4] sm:$0xf]
        %v409 = vld [vmem:[%s363 + $0x8] sm:$0xf]
        %v410 = vld [vmem:[%s363 + $0xc] sm:$0xf]
        %v411 = vld [vmem:[%s363 + $0x10] sm:$0xf]
        %v412 = vld [vmem:[%s363 + $0x14] sm:$0xf]
        %v413 = vld [vmem:[%s363 + $0x18] sm:$0xf]
        %v414 = vld [vmem:[%s363 + $0x1c] sm:$0xf]
        %v415 = vunpack.c.l.bf16 %v407
        %v416 = vunpack.c.l.bf16 %v408
        %v417 = vunpack.c.l.bf16 %v409
        %v418 = vunpack.c.l.bf16 %v410
        %v419 = vunpack.c.l.bf16 %v411
        %v420 = vunpack.c.l.bf16 %v412
        %v421 = vunpack.c.l.bf16 %v413
        %v422 = vunpack.c.l.bf16 %v414
        %v423 = vld [vmem:[%s379] sm:$0x1]
        %v425 = vperm.slane %v423, 0
        %v427 = vmul.f32 %v415, %v425
        %v428 = vmul.f32 %v416, %v425
        %v429 = vmul.f32 %v417, %v425
        %v430 = vmul.f32 %v418, %v425
        %v431 = vmul.f32 %v419, %v425
        %v432 = vmul.f32 %v420, %v425
        %v433 = vmul.f32 %v421, %v425
        %v434 = vmul.f32 %v422, %v425
        %v435 = vld [vmem:[%s382] sm:$0x1]
        %v437 = vperm.slane %v435, 0
        %v439 = vadd.f32 %v427, %v437
        %v440 = vadd.f32 %v428, %v437
        %v441 = vadd.f32 %v429, %v437
        %v442 = vadd.f32 %v430, %v437
        %v443 = vadd.f32 %v431, %v437
        %v444 = vadd.f32 %v432, %v437
        %v445 = vadd.f32 %v433, %v437
        %v446 = vadd.f32 %v434, %v437
        %v447 = vmax.f32 %v439, 0.0
        %v448 = vmax.f32 %v440, 0.0
        %v449 = vmax.f32 %v441, 0.0
        %v450 = vmax.f32 %v442, 0.0
        %v451 = vmax.f32 %v443, 0.0
        %v452 = vmax.f32 %v444, 0.0
        %v453 = vmax.f32 %v445, 0.0
        %v454 = vmax.f32 %v446, 0.0
        %v455 = vpack.c.bf16 %v448, %v447
        %v456 = vpack.c.bf16 %v450, %v449
        %v457 = vpack.c.bf16 %v452, %v451
        %v458 = vpack.c.bf16 %v454, %v453
        %v459 = vld [vmem:[#allocation2] sm:$0xff]
        %v460 = vld [vmem:[#allocation2 + $0x8] sm:$0xff]
        %v461 = vld [vmem:[#allocation2 + $0x10] sm:$0xff]
        %v462 = vld [vmem:[#allocation2 + $0x18] sm:$0xff]
        %v463 = vld [vmem:[#allocation2 + $0x20] sm:$0xff]
        %v464 = vld [vmem:[#allocation2 + $0x28] sm:$0xff]
        %v465 = vld [vmem:[#allocation2 + $0x30] sm:$0xff]
        %v466 = vld [vmem:[#allocation2 + $0x38] sm:$0xff]
        %v467 = vld [vmem:[%s372] sm:$0xf]
        %v468 = vld [vmem:[%s372 + $0x4] sm:$0xf]
        %v471 = vunpack.c.l.b16 %v467
        %v472 = vunpack.c.l.b16 %v468
        %v473 = vpack.c.b16 %v472, %v471
        %vm475 = vcmask 130048
        %v477 = vsel %vm475, %v455, 0
        %v480 = vsel %vm475, %v456, 0
        %v483 = vsel %vm475, %v457, 0
        %v486 = vsel %vm475, %v458, 0
        %488 = vmatpush.bf16.msra.mxu0 0
        %489 = vmatpush.bf16.msra.mxu0 0
        %490 = vmatpush.bf16.msra.mxu0 0
        %491 = vmatpush.bf16.msra.mxu0 0
        %492 = vmatpush.bf16.msra.mxu0 0
        %493 = vmatpush.bf16.msra.mxu0 0
        %494 = vmatpush.bf16.msra.mxu0 0
        %495 = vmatpush.bf16.msra.mxu0 %v473
        %496 = vmatmul.bf16.gmra.mxu0 %v477
        %v497 = vpop.f32.mrf.mxu0
        %v498 = vadd.f32 0.0, %v497
        %v499 = vpop.f32.mrf.mxu0
        %v500 = vadd.f32 0.0, %v499
        %501 = vmatmul.bf16.gmra.mxu0 %v480
        %v502 = vpop.f32.mrf.mxu0
        %v503 = vadd.f32 0.0, %v502
        %v504 = vpop.f32.mrf.mxu0
        %v505 = vadd.f32 0.0, %v504
        %506 = vmatmul.bf16.gmra.mxu0 %v483
        %v507 = vpop.f32.mrf.mxu0
        %v508 = vadd.f32 0.0, %v507
        %v509 = vpop.f32.mrf.mxu0
        %v510 = vadd.f32 0.0, %v509
        %511 = vmatmul.bf16.gmra.mxu0 %v486
        %v512 = vpop.f32.mrf.mxu0
        %v513 = vadd.f32 0.0, %v512
        %v514 = vpop.f32.mrf.mxu0
        %v515 = vadd.f32 0.0, %v514
        %516 = vdwg.mxu0
        %v517 = vadd.f32 %v459, %v498
        %v518 = vadd.f32 %v460, %v500
        %v519 = vadd.f32 %v461, %v503
        %v520 = vadd.f32 %v462, %v505
        %v521 = vadd.f32 %v463, %v508
        %v522 = vadd.f32 %v464, %v510
        %v523 = vadd.f32 %v465, %v513
        %v524 = vadd.f32 %v466, %v515
        %vm525 = vcmask 523264
        %526 = vst.msk [vmem:[#allocation2] sm:$0xff] %vm525, %v517
        %527 = vst.msk [vmem:[#allocation2 + $0x8] sm:$0xff] %vm525, %v518
        %528 = vst.msk [vmem:[#allocation2 + $0x10] sm:$0xff] %vm525, %v519
        %529 = vst.msk [vmem:[#allocation2 + $0x18] sm:$0xff] %vm525, %v520
        %530 = vst.msk [vmem:[#allocation2 + $0x20] sm:$0xff] %vm525, %v521
        %531 = vst.msk [vmem:[#allocation2 + $0x28] sm:$0xff] %vm525, %v522
        %532 = vst.msk [vmem:[#allocation2 + $0x30] sm:$0xff] %vm525, %v523
        %533 = vst.msk [vmem:[#allocation2 + $0x38] sm:$0xff] %vm525, %v524
        // Predicated region
        $region49: #{preact_bottleneck_forward.7} parent=43 // pred_check
          %p534 = pneg %p394
        $region50: #{preact_bottleneck_forward.7} parent=43 // pred_check_branch
          %536 = sbr.rel (%p534) target = $region52
        $region51: #{preact_bottleneck_forward.7} parent=43 // pred_region
          %v537 = vld [vmem:[#allocation2] sm:$0xff]
          %v538 = vld [vmem:[#allocation2 + $0x8] sm:$0xff]
          %v539 = vld [vmem:[#allocation2 + $0x10] sm:$0xff]
          %v540 = vld [vmem:[#allocation2 + $0x18] sm:$0xff]
          %v541 = vld [vmem:[#allocation2 + $0x20] sm:$0xff]
          %v542 = vld [vmem:[#allocation2 + $0x28] sm:$0xff]
          %v543 = vld [vmem:[#allocation2 + $0x30] sm:$0xff]
          %v544 = vld [vmem:[#allocation2 + $0x38] sm:$0xff]
          %v545 = vld [vmem:[%s376] sm:$0x1]
          %v547 = vperm.slane %v545, 0
          %v549 = vadd.f32 %v537, %v547
          %v550 = vadd.f32 %v538, %v547
          %v551 = vadd.f32 %v539, %v547
          %v552 = vadd.f32 %v540, %v547
          %v553 = vadd.f32 %v541, %v547
          %v554 = vadd.f32 %v542, %v547
          %v555 = vadd.f32 %v543, %v547
          %v556 = vadd.f32 %v544, %v547
          %v557 = vld [vmem:[%s390] sm:$0xf]
          %v558 = vld [vmem:[%s390 + $0x4] sm:$0xf]
          %v559 = vld [vmem:[%s390 + $0x8] sm:$0xf]
          %v560 = vld [vmem:[%s390 + $0xc] sm:$0xf]
          %v561 = vld [vmem:[%s390 + $0x10] sm:$0xf]
          %v562 = vld [vmem:[%s390 + $0x14] sm:$0xf]
          %v563 = vld [vmem:[%s390 + $0x18] sm:$0xf]
          %v564 = vld [vmem:[%s390 + $0x1c] sm:$0xf]
          %v565 = vunpack.c.l.bf16 %v557
          %v566 = vunpack.c.l.bf16 %v558
          %v567 = vunpack.c.l.bf16 %v559
          %v568 = vunpack.c.l.bf16 %v560
          %v569 = vunpack.c.l.bf16 %v561
          %v570 = vunpack.c.l.bf16 %v562
          %v571 = vunpack.c.l.bf16 %v563
          %v572 = vunpack.c.l.bf16 %v564
          %v573 = vadd.f32 %v549, %v565
          %v574 = vadd.f32 %v550, %v566
          %v575 = vadd.f32 %v551, %v567
          %v576 = vadd.f32 %v552, %v568
          %v577 = vadd.f32 %v553, %v569
          %v578 = vadd.f32 %v554, %v570
          %v579 = vadd.f32 %v555, %v571
          %v580 = vadd.f32 %v556, %v572
          %581 = vst.msk [vmem:[%s355] sm:$0xff] %vm525, %v573
          %582 = vst.msk [vmem:[%s355 + $0x8] sm:$0xff] %vm525, %v574
          %583 = vst.msk [vmem:[%s355 + $0x10] sm:$0xff] %vm525, %v575
          %584 = vst.msk [vmem:[%s355 + $0x18] sm:$0xff] %vm525, %v576
          %585 = vst.msk [vmem:[%s355 + $0x20] sm:$0xff] %vm525, %v577
          %586 = vst.msk [vmem:[%s355 + $0x28] sm:$0xff] %vm525, %v578
          %587 = vst.msk [vmem:[%s355 + $0x30] sm:$0xff] %vm525, %v579
          %588 = vst.msk [vmem:[%s355 + $0x38] sm:$0xff] %vm525, %v580
        $region52: #{preact_bottleneck_forward.7} parent=43 // pred_fallthru
          _
        %s589 = sand.u32 %s211, 1
        %s590 = scalar_lea.sflag [#allocation4], %s589
        %s591 = sand.u32 %s211, 1
        %s592 = smul.addr %s591, 64
        %s593 = scalar_lea.vmem [#allocation3], %s592
        // Predicated region
        $region53: #{preact_bottleneck_forward.7} parent=43 // pred_check
          %p594 = pneg %p221
        $region54: #{preact_bottleneck_forward.7} parent=43 // pred_check_branch
          %596 = sbr.rel (%p594) target = $region56
        $region55: #{preact_bottleneck_forward.7} parent=43 // pred_region
          %s597 = smul.u32 8, %s25
          %599 = vsyncadd %s590, 0
          %s600 = sadd.s32 %s26, %s597
          %s601 = smul.addr %s600, 8
          %s602 = scalar_lea.hbm %s6, %s601
          %s603 = sshll.u32 %s593, 4
          %s604 = int_to_ptr.vmem [resolvable:$true] %s603
          %s605 = sshll.u32 %s602, 4
          %s606 = int_to_ptr.hbm [resolvable:$true] %s605
          %611 = dma.vmem_to_hbm [thread:$0]  %s604, 1024, %s606, %s590, 128, 128, 8
        $region56: #{preact_bottleneck_forward.7} parent=43 // pred_fallthru
          _
      $region44: #{preact_bottleneck_forward.7} parent=5 // pred_fallthru
        _
      %p612 = scmp.le.s32.totalorder 2, %s15
      // Predicated region
      $region57: #{preact_bottleneck_forward.7} parent=5 // pred_check
        %p613 = pneg %p612
      $region58: #{preact_bottleneck_forward.7} parent=5 // pred_check_branch
        %615 = sbr.rel (%p613) target = $region60
      $region59: #{preact_bottleneck_forward.7} parent=5 // pred_region
        %s616 = ssub.s32 %s15, 2
        // Predicated region
        $region61: #{preact_bottleneck_forward.7} parent=59 // pred_check
          %p617 = pneg %p227
        $region62: #{preact_bottleneck_forward.7} parent=59 // pred_check_branch
          %619 = sbr.rel (%p617) target = $region64
        $region63: #{preact_bottleneck_forward.7} parent=59 // pred_region
          %s620 = sand.u32 %s212, 1
          %s621 = scalar_lea.sflag [#allocation4], %s620
          %s622 = sand.u32 %s212, 1
          %s623 = smul.addr %s622, 64
          %s624 = scalar_lea.vmem [#allocation3], %s623
          %626 = dma.done %s621, 1024
        $region64: #{preact_bottleneck_forward.7} parent=59 // pred_fallthru
          _
      $region60: #{preact_bottleneck_forward.7} parent=5 // pred_fallthru
        _
    $region6: #{preact_bottleneck_forward.7} parent=1 // loop_footer
      %s19 = sadd.s32 1, %s15
    $region7: #{preact_bottleneck_forward.7} parent=1 // loop_footer_branch
      %14 = sbr.rel target = $region3
    $region8: #{preact_bottleneck_forward.7} parent=1 // loop_exit
      _
    %627 = vsyncpa [#allocation4], 1
    %s628 = scalar_lea.sflag [#allocation4], 1
    %629 = vsyncpa %s628, 1

</llo_original>
